<compile_context>
chip_gen: v7x
topology: tpu7x:2x2x1
jax: 0.10.0
libtpu: 0.0.40
codegen_flags: <defaults>
</compile_context>

<pallas_src>
import jax
import jax.numpy as jnp
from jax.experimental import pallas as pl
from jax.experimental.pallas import tpu as pltpu


def _round_up(n, m):
    return ((n + m - 1) // m) * m


def _sciscore_kernel(exp_scale_ref,   # SMEM scalar prefetch: (1,) f32 exp(logit_scale)
                     img_h_ref,       # [TB, Hi] pooled image hidden states (streamed)
                     txt_h_ref,       # [TB, Ht] pooled text hidden states  (streamed)
                     w_img_ref,       # [Hi, E]  visual projection (VMEM-resident, 1-buffered)
                     w_txt_ref,       # [Ht, E]  text projection   (VMEM-resident, 1-buffered)
                     out_ref):        # [1, TB]  lane-dense score row
    # Projection heads on the MXU: low-precision operands, f32 accumulation.
    img_emb = jnp.dot(img_h_ref[...], w_img_ref[...],
                      preferred_element_type=jnp.float32)
    txt_emb = jnp.dot(txt_h_ref[...], w_txt_ref[...],
                      preferred_element_type=jnp.float32)

    # Fused F.normalize(dim=-1) + diagonal of image_embeds @ text_embeds.T:
    #   score_b = <img_b, txt_b> / (max(||img_b||, eps) * max(||txt_b||, eps))
    # Cross-lane reductions hit the XLU slot and rsqrt the EUP slot, both
    # essentially free relative to the MXU work.
    num = jnp.sum(img_emb * txt_emb, axis=-1)     # (TB,)
    ss_i = jnp.sum(img_emb * img_emb, axis=-1)    # (TB,)
    ss_t = jnp.sum(txt_emb * txt_emb, axis=-1)    # (TB,)
    eps2 = jnp.float32(1e-24)                     # (1e-12)**2
    inv = jax.lax.rsqrt(jnp.maximum(ss_i, eps2)) * jax.lax.rsqrt(
        jnp.maximum(ss_t, eps2))
    scores = num * inv * exp_scale_ref[0]         # (TB,) f32

    # Lane-dense row store: one unmasked (1, TB) vst per grid step instead of
    # a broadcast (TB, 128) slab -> 128x less output HBM traffic.
    out_ref[...] = scores[None, :].astype(out_ref.dtype)


def sciscore_forward(image_hidden, text_hidden, w_img, w_txt, logit_scale,
                     *, block_b=256, compute_dtype=jnp.bfloat16):
    """Returns scores with shape (B,), matching the PyTorch module output."""
    B, Hi = image_hidden.shape
    Bt, Ht = text_hidden.shape
    assert B == Bt, "one prompt per image (diagonal scoring)"
    E = w_img.shape[1]
    assert w_img.shape[0] == Hi and w_txt.shape == (Ht, E)

    # MXU operands in the low-precision compute dtype; f32 accumulation and a
    # f32 normalization epilogue happen inside the kernel.
    in_dt = jnp.dtype(compute_dtype)
    image_hidden = image_hidden.astype(in_dt)
    text_hidden = text_hidden.astype(in_dt)
    w_img = w_img.astype(in_dt)
    w_txt = w_txt.astype(in_dt)

    # Batch tile: adapt down for small batches (don't pad B=20 up to 256), and
    # keep the sublane dim aligned to the packed-dtype granularity.  When the
    # grid has more than one step, force tb to a multiple of 128 so the (1, tb)
    # output block stays a full-lane, unmasked store.
    sub = {4: 8, 2: 16, 1: 32}.get(in_dt.itemsize, 8)
    tb_cap = _round_up(B, sub)
    tb = min(_round_up(int(block_b), sub), tb_cap)
    if tb < tb_cap:                       # multi-tile grid
        tb = _round_up(max(tb, 128), 128)
    b_pad = _round_up(B, tb)
    n_tiles = b_pad // tb

    # Pad the batch; zero rows score exactly 0.0 (eps guard) and are sliced off
    # below -- no in-kernel masking needed.
    if b_pad != B:
        image_hidden = jnp.pad(image_hidden, ((0, b_pad - B), (0, 0)))
        text_hidden = jnp.pad(text_hidden, ((0, b_pad - B), (0, 0)))

    # exp(logit_scale) hoisted out of the kernel, handed in via scalar prefetch.
    exp_scale = jnp.exp(jnp.asarray(logit_scale, jnp.float32)).reshape((1,))

    # VMEM budget: 2x double-buffered hidden tiles + single-buffered weights +
    # double-buffered (1, tb) output rows + f32 embedding intermediates.
    # Capped at 48 MiB so it never exceeds v7x's 64 MiB physical VMEM per TC.
    isz = in_dt.itemsize
    vmem_need = (2 * tb * (Hi + Ht) * isz
                 + (Hi + Ht) * E * isz
                 + 2 * tb * 4
                 + 3 * tb * E * 4)
    vmem_limit = int(min(max(4 * vmem_need, 16 << 20), 48 << 20))

    cost = pl.CostEstimate(
        flops=2 * b_pad * (Hi + Ht) * E + 8 * b_pad * E,
        transcendentals=2 * b_pad,
        bytes_accessed=(b_pad * (Hi + Ht) * isz
                        + (Hi + Ht) * E * isz
                        + b_pad * 4),
    )

    out = pl.pallas_call(
        _sciscore_kernel,
        out_shape=jax.ShapeDtypeStruct((1, b_pad), jnp.float32),
        grid_spec=pltpu.PrefetchScalarGridSpec(
            num_scalar_prefetch=1,
            grid=(n_tiles,),
            in_specs=[
                # Hidden-state tiles stream over the batch grid (double-buffered).
                pl.BlockSpec((tb, Hi), lambda i, s: (i, 0)),
                pl.BlockSpec((tb, Ht), lambda i, s: (i, 0)),
                # Projection weights: constant block index -> VMEM-resident;
                # single-buffered to reclaim the wasted second copy.
                pl.BlockSpec((Hi, E), lambda i, s: (0, 0),
                             pipeline_mode=pl.Buffered(buffer_count=1)),
                pl.BlockSpec((Ht, E), lambda i, s: (0, 0),
                             pipeline_mode=pl.Buffered(buffer_count=1)),
            ],
            out_specs=pl.BlockSpec((1, tb), lambda i, s: (0, i)),
        ),
        compiler_params=pltpu.CompilerParams(
            dimension_semantics=("parallel",),   # megacore-shard the batch grid
            vmem_limit_bytes=vmem_limit),
        cost_estimate=cost,
    )(exp_scale, image_hidden, text_hidden, w_img, w_txt)

    return out[0, :B]


def _reference(image_hidden, text_hidden, w_img, w_txt, logit_scale,
               compute_dtype=jnp.bfloat16):
    # Matches the module semantics; operands rounded to the kernel's compute
    # dtype so tolerances stay tight (accumulation stays f32 in both paths).
    def prep(x):
        return x.astype(compute_dtype).astype(jnp.float32)

    def norm(x):
        n = jnp.sqrt(jnp.sum(x * x, axis=-1, keepdims=True))
        return x / jnp.maximum(n, 1e-12)

    ie = norm(jnp.dot(prep(image_hidden), prep(w_img),
                      precision=jax.lax.Precision.HIGHEST))
    te = norm(jnp.dot(prep(text_hidden), prep(w_txt),
                      precision=jax.lax.Precision.HIGHEST))
    logits = ie @ te.T
    return jnp.diagonal(logits) * jnp.exp(jnp.float32(logit_scale))


if __name__ == "__main__":
    # 200 image/prompt pairs, hidden = embed = 128 (lane-aligned, small).
    B, H_IMG, H_TXT, EMB = 200, 128, 128, 128

    key = jax.random.PRNGKey(0)
    k_img, k_txt, k_wi, k_wt = jax.random.split(key, 4)

    # Synthetic pooled hidden states (stand-in for the CLIP backbones).
    image_hidden = jax.random.normal(k_img, (B, H_IMG), dtype=jnp.float32)
    text_hidden = jax.random.normal(k_txt, (B, H_TXT), dtype=jnp.float32)

    # Deterministic projection weights and logit_scale (CLIP init: ln(1/0.07)).
    w_img = jax.random.normal(k_wi, (H_IMG, EMB), dtype=jnp.float32) * 0.02
    w_txt = jax.random.normal(k_wt, (H_TXT, EMB), dtype=jnp.float32) * 0.02
    logit_scale = jnp.log(1.0 / 0.07)

    ref = _reference(image_hidden, text_hidden, w_img, w_txt, logit_scale)

    # Path 1: default tile (adapts down to round_up(B, 16) = 208, single step).
    scores = sciscore_forward(image_hidden, text_hidden, w_img, w_txt,
                              logit_scale)
    jax.block_until_ready(scores)
    assert scores.shape == (B,), scores.shape
    assert jnp.allclose(scores, ref, atol=5e-3, rtol=5e-3), (scores, ref)

    # Path 2: multi-step grid (2 tiles of 128) + 56 padded tail rows.
    scores_tiled = sciscore_forward(image_hidden, text_hidden, w_img, w_txt,
                                    logit_scale, block_b=128)
    jax.block_until_ready(scores_tiled)
    assert scores_tiled.shape == (B,), scores_tiled.shape
    assert jnp.allclose(scores_tiled, ref, atol=5e-3, rtol=5e-3), (scores_tiled, ref)

    print("KERNEL_OK")
</pallas_src>

<mosaic_0001>
module attributes {stable_mosaic.version = 11 : i64} {
  func.func @_sciscore_kernel(%arg0: i32, %arg1: memref<1xf32, #tpu.memory_space<smem>>, %arg2: memref<208x128xbf16, #tpu.memory_space<vmem>>, %arg3: memref<208x128xbf16, #tpu.memory_space<vmem>>, %arg4: memref<128x128xbf16, #tpu.memory_space<vmem>>, %arg5: memref<128x128xbf16, #tpu.memory_space<vmem>>, %arg6: memref<1x208xf32, #tpu.memory_space<vmem>>) attributes {dimension_semantics = [#tpu.dimension_semantics<parallel>], iteration_bounds = array<i64: 1>, scalar_prefetch = 1 : i64, scratch_operands = 0 : i64, tpu.core_type = #tpu.core_type<tc>, window_params = [{transform_indices = @transform_0, window_bounds = array<i64: 208, 128>}, {transform_indices = @transform_1, window_bounds = array<i64: 208, 128>}, {pipeline_mode = #tpu.pipeline_mode<synchronous>, transform_indices = @transform_2, window_bounds = array<i64: 128, 128>}, {pipeline_mode = #tpu.pipeline_mode<synchronous>, transform_indices = @transform_3, window_bounds = array<i64: 128, 128>}, {transform_indices = @transform_4, window_bounds = array<i64: 1, 208>}]} {
    %c0 = arith.constant 0 : index
    %c0_0 = arith.constant 0 : index
    %0 = vector.load %arg2[%c0, %c0_0] : memref<208x128xbf16, #tpu.memory_space<vmem>>, vector<208x128xbf16>
    %c0_1 = arith.constant 0 : index
    %c0_2 = arith.constant 0 : index
    %1 = vector.load %arg4[%c0_1, %c0_2] : memref<128x128xbf16, #tpu.memory_space<vmem>>, vector<128x128xbf16>
    %cst = arith.constant dense<0.000000e+00> : vector<208x128xf32>
    %2 = tpu.matmul %0, %1, %cst {dimension_numbers = #tpu.dot_dimension_numbers<[1], [0], [0], [1], [0, 0, 1, 1], [], []>} : vector<208x128xbf16>, vector<128x128xbf16>, vector<208x128xf32> -> vector<208x128xf32>
    %c0_3 = arith.constant 0 : index
    %c0_4 = arith.constant 0 : index
    %3 = vector.load %arg3[%c0_3, %c0_4] : memref<208x128xbf16, #tpu.memory_space<vmem>>, vector<208x128xbf16>
    %c0_5 = arith.constant 0 : index
    %c0_6 = arith.constant 0 : index
    %4 = vector.load %arg5[%c0_5, %c0_6] : memref<128x128xbf16, #tpu.memory_space<vmem>>, vector<128x128xbf16>
    %cst_7 = arith.constant dense<0.000000e+00> : vector<208x128xf32>
    %5 = tpu.matmul %3, %4, %cst_7 {dimension_numbers = #tpu.dot_dimension_numbers<[1], [0], [0], [1], [0, 0, 1, 1], [], []>} : vector<208x128xbf16>, vector<128x128xbf16>, vector<208x128xf32> -> vector<208x128xf32>
    %6 = arith.mulf %2, %5 : vector<208x128xf32>
    %cst_8 = arith.constant dense<0.000000e+00> : vector<208xf32>
    %7 = vector.multi_reduction <add>, %6, %cst_8 [1] : vector<208x128xf32> to vector<208xf32>
    %8 = arith.mulf %2, %2 : vector<208x128xf32>
    %cst_9 = arith.constant dense<0.000000e+00> : vector<208xf32>
    %9 = vector.multi_reduction <add>, %8, %cst_9 [1] : vector<208x128xf32> to vector<208xf32>
    %10 = arith.mulf %5, %5 : vector<208x128xf32>
    %cst_10 = arith.constant dense<0.000000e+00> : vector<208xf32>
    %11 = vector.multi_reduction <add>, %10, %cst_10 [1] : vector<208x128xf32> to vector<208xf32>
    %cst_11 = arith.constant 1.000000e-24 : f32
    %12 = vector.broadcast %cst_11 : f32 to vector<208xf32>
    %13 = arith.maximumf %9, %12 : vector<208xf32>
    %14 = math.rsqrt %13 : vector<208xf32>
    %cst_12 = arith.constant 1.000000e-24 : f32
    %15 = vector.broadcast %cst_12 : f32 to vector<208xf32>
    %16 = arith.maximumf %11, %15 : vector<208xf32>
    %17 = math.rsqrt %16 : vector<208xf32>
    %18 = arith.mulf %14, %17 : vector<208xf32>
    %19 = arith.mulf %7, %18 : vector<208xf32>
    %c0_13 = arith.constant 0 : index
    %20 = memref.load %arg1[%c0_13] : memref<1xf32, #tpu.memory_space<smem>>
    %21 = vector.broadcast %20 : f32 to vector<208xf32>
    %22 = arith.mulf %19, %21 : vector<208xf32>
    %23 = vector.shape_cast %22 : vector<208xf32> to vector<1x208xf32>
    %c0_14 = arith.constant 0 : index
    %c0_15 = arith.constant 0 : index
    %24 = vector.load %arg6[%c0_14, %c0_15] : memref<1x208xf32, #tpu.memory_space<vmem>>, vector<1x208xf32>
    tpu.vector_store %arg6[%c0_14, %c0_15], %23 {strides = array<i32>} : memref<1x208xf32, #tpu.memory_space<vmem>>, vector<1x208xf32>,
    return
  }
  func.func @transform_0(%arg0: i32, %arg1: memref<1xf32, #tpu.memory_space<smem>>) -> (i32, i32) {
    %c0_i32 = arith.constant 0 : i32
    %c0_i32_0 = arith.constant 0 : i32
    return %arg0, %c0_i32 : i32, i32
  }
  func.func @transform_1(%arg0: i32, %arg1: memref<1xf32, #tpu.memory_space<smem>>) -> (i32, i32) {
    %c0_i32 = arith.constant 0 : i32
    %c0_i32_0 = arith.constant 0 : i32
    return %arg0, %c0_i32 : i32, i32
  }
  func.func @transform_2(%arg0: i32, %arg1: memref<1xf32, #tpu.memory_space<smem>>) -> (i32, i32) {
    %c0_i32 = arith.constant 0 : i32
    %c0_i32_0 = arith.constant 0 : i32
    %c0_i32_1 = arith.constant 0 : i32
    return %c0_i32, %c0_i32_0 : i32, i32
  }
  func.func @transform_3(%arg0: i32, %arg1: memref<1xf32, #tpu.memory_space<smem>>) -> (i32, i32) {
    %c0_i32 = arith.constant 0 : i32
    %c0_i32_0 = arith.constant 0 : i32
    %c0_i32_1 = arith.constant 0 : i32
    return %c0_i32, %c0_i32_0 : i32, i32
  }
  func.func @transform_4(%arg0: i32, %arg1: memref<1xf32, #tpu.memory_space<smem>>) -> (i32, i32) {
    %c0_i32 = arith.constant 0 : i32
    %c0_i32_0 = arith.constant 0 : i32
    return %c0_i32, %arg0 : i32, i32
  }
}

</mosaic_0001>

<llo_original>
// kernel: tpu_custom_call.1
$region0: #{tpu_custom_call.1}
  #allocation0 [shape = 'u32[]', space=smem, size = 0x4, offset = 0x4, fixed_abs, tag = 'smem constant byte address 0x4 - core index']
  #allocation1 [shape = 'u32[144,128]{1,0:T(1,128)}', space=vmem, size = 0x12000, scoped, tag = 'internal scratch']
  #allocation2 [shape = 's32[1]{0}', space=sflag, size = 0x4, scoped, tag = 'scoped memory for tpu_custom_call.1']
  #allocation3 [shape = 'f32[1]{0:T(128)S(6)}', space=smem, size = 0x200, scoped, tag = 'prefetched SMEM operand 0']
  %s0 = inlined_call_operand.<no memory space> [shape: f32[1], index: 0, kind: input, shape index: {}]
  %s1 = inlined_call_operand.hbm [shape: bf16[208,128], index: 1, kind: input, shape index: {}]
  %s2 = inlined_call_operand.hbm [shape: bf16[208,128], index: 2, kind: input, shape index: {}]
  %s3 = inlined_call_operand.hbm [shape: bf16[128,128], index: 3, kind: input, shape index: {}]
  %s4 = inlined_call_operand.hbm [shape: bf16[128,128], index: 4, kind: input, shape index: {}]
  %s5 = inlined_call_operand.hbm [shape: f32[1,208], index: 5, kind: output, shape index: {}]
  %s6 = sld [smem:[#allocation0]]
  $region42: #{tpu_custom_call.1} parent=0
    _
  %s8 = ssub.s32 1, %s6
  %s9 = scalar_select 0, %s8, %s6
  %10 = sst [smem:[#allocation3]] %s0
  $region1: #{tpu_custom_call.1} parent=0
    #allocation4 [shape = 'u8[53248]{0}', space=vmem, size = 0xd000, scoped, tag = 'input window, operand 1, single buffered']
    #allocation5 [shape = 's32[1]{0}', space=sflag, size = 0x4, scoped, tag = 'scoped memory for tpu_custom_call.1']
    #allocation6 [shape = 's32[1]{0}', space=sflag, size = 0x4, scoped, tag = 'scoped memory for tpu_custom_call.1']
    #allocation7 [shape = 'u8[53248]{0}', space=vmem, size = 0xd000, scoped, tag = 'input window, operand 2, single buffered']
    #allocation8 [shape = 's32[1]{0}', space=sflag, size = 0x4, scoped, tag = 'scoped memory for tpu_custom_call.1']
    #allocation9 [shape = 'u8[32768]{0}', space=vmem, size = 0x8000, scoped, tag = 'input window, operand 3, single buffered']
    #allocation10 [shape = 'u8[32768]{0}', space=vmem, size = 0x8000, scoped, tag = 'input window, operand 4, single buffered']
    #allocation11 [shape = 's32[1]{0}', space=sflag, size = 0x4, scoped, tag = 'scoped memory for tpu_custom_call.1']
    #allocation12 [shape = 'u8[1024]{0}', space=vmem, size = 0x400, scoped, tag = 'output window, operand 0, single buffered']
    %11 = vsyncpa [#allocation5], 0
    %12 = vsyncpa [#allocation8], 0
    %13 = vsyncpa [#allocation11], 0
    %14 = vsyncpa [#allocation6], 0
    // Predicated region
    $region2: #{tpu_custom_call.1} parent=1 // pred_check
      _
    $region3: #{tpu_custom_call.1} parent=1 // pred_check_branch
      %16 = sbr.rel (0) target = $region5
    $region4: #{tpu_custom_call.1} parent=1 // pred_region
      %s18 = ssub.s32 1664, 1664
      %19 = vsyncadd [#allocation5], %s18
      %s20 = sshll.u32 [#allocation4], 4
      %s21 = int_to_ptr.vmem [resolvable:$true] %s20
      %26 = dma.hbm_to_vmem [thread:$0]  %s1, 1664, %s21, [#allocation5], 64, 64, 4
    $region5: #{tpu_custom_call.1} parent=1 // pred_fallthru
      _
    // Predicated region
    $region6: #{tpu_custom_call.1} parent=1 // pred_check
      _
    $region7: #{tpu_custom_call.1} parent=1 // pred_check_branch
      %28 = sbr.rel (0) target = $region9
    $region8: #{tpu_custom_call.1} parent=1 // pred_region
      %s30 = ssub.s32 1664, 1664
      %31 = vsyncadd [#allocation8], %s30
      %s32 = sshll.u32 [#allocation7], 4
      %s33 = int_to_ptr.vmem [resolvable:$true] %s32
      %38 = dma.hbm_to_vmem [thread:$0]  %s2, 1664, %s33, [#allocation8], 64, 64, 4
    $region9: #{tpu_custom_call.1} parent=1 // pred_fallthru
      _
    // Predicated region
    $region10: #{tpu_custom_call.1} parent=1 // pred_check
      _
    $region11: #{tpu_custom_call.1} parent=1 // pred_check_branch
      %40 = sbr.rel (0) target = $region13
    $region12: #{tpu_custom_call.1} parent=1 // pred_region
      %s42 = ssub.s32 1024, 1024
      %43 = vsyncadd [#allocation8], %s42
      %s44 = sshll.u32 [#allocation9], 4
      %s45 = int_to_ptr.vmem [resolvable:$true] %s44
      %50 = dma.hbm_to_vmem [thread:$0]  %s3, 1024, %s45, [#allocation8], 64, 64, 4
    $region13: #{tpu_custom_call.1} parent=1 // pred_fallthru
      _
    // Predicated region
    $region14: #{tpu_custom_call.1} parent=1 // pred_check
      _
    $region15: #{tpu_custom_call.1} parent=1 // pred_check_branch
      %52 = sbr.rel (0) target = $region17
    $region16: #{tpu_custom_call.1} parent=1 // pred_region
      %s54 = ssub.s32 1024, 1024
      %55 = vsyncadd [#allocation11], %s54
      %s56 = sshll.u32 [#allocation10], 4
      %s57 = int_to_ptr.vmem [resolvable:$true] %s56
      %62 = dma.hbm_to_vmem [thread:$0]  %s4, 1024, %s57, [#allocation11], 64, 64, 4
    $region17: #{tpu_custom_call.1} parent=1 // pred_fallthru
      _
    // Predicated region
    $region18: #{tpu_custom_call.1} parent=1 // pred_check
      _
    $region19: #{tpu_custom_call.1} parent=1 // pred_check_branch
      %64 = sbr.rel (0) target = $region21
    $region20: #{tpu_custom_call.1} parent=1 // pred_region
      %65 = dma.done [#allocation5], 1664
    $region21: #{tpu_custom_call.1} parent=1 // pred_fallthru
      _
    // Predicated region
    $region22: #{tpu_custom_call.1} parent=1 // pred_check
      _
    $region23: #{tpu_custom_call.1} parent=1 // pred_check_branch
      %67 = sbr.rel (0) target = $region25
    $region24: #{tpu_custom_call.1} parent=1 // pred_region
      %68 = dma.done [#allocation8], 1664
    $region25: #{tpu_custom_call.1} parent=1 // pred_fallthru
      _
    // Predicated region
    $region26: #{tpu_custom_call.1} parent=1 // pred_check
      _
    $region27: #{tpu_custom_call.1} parent=1 // pred_check_branch
      %70 = sbr.rel (0) target = $region29
    $region28: #{tpu_custom_call.1} parent=1 // pred_region
      %71 = dma.done [#allocation8], 1024
    $region29: #{tpu_custom_call.1} parent=1 // pred_fallthru
      _
    // Predicated region
    $region30: #{tpu_custom_call.1} parent=1 // pred_check
      _
    $region31: #{tpu_custom_call.1} parent=1 // pred_check_branch
      %73 = sbr.rel (0) target = $region33
    $region32: #{tpu_custom_call.1} parent=1 // pred_region
      %74 = dma.done [#allocation11], 1024
    $region33: #{tpu_custom_call.1} parent=1 // pred_fallthru
      _
    %v76 = vld [vmem:[#allocation4] sm:$0xf]
    %v77 = vld [vmem:[#allocation4 + $0x4] sm:$0xf]
    %v78 = vld [vmem:[#allocation4 + $0x8] sm:$0xf]
    %v79 = vld [vmem:[#allocation4 + $0xc] sm:$0xf]
    %v80 = vld [vmem:[#allocation4 + $0x10] sm:$0xf]
    %v81 = vld [vmem:[#allocation4 + $0x14] sm:$0xf]
    %v82 = vld [vmem:[#allocation4 + $0x18] sm:$0xf]
    %v83 = vld [vmem:[#allocation4 + $0x1c] sm:$0xf]
    %v84 = vld [vmem:[#allocation4 + $0x20] sm:$0xf]
    %v85 = vld [vmem:[#allocation4 + $0x24] sm:$0xf]
    %v86 = vld [vmem:[#allocation4 + $0x28] sm:$0xf]
    %v87 = vld [vmem:[#allocation4 + $0x2c] sm:$0xf]
    %v88 = vld [vmem:[#allocation4 + $0x30] sm:$0xf]
    %v89 = vld [vmem:[#allocation4 + $0x34] sm:$0xf]
    %v90 = vld [vmem:[#allocation4 + $0x38] sm:$0xf]
    %v91 = vld [vmem:[#allocation4 + $0x3c] sm:$0xf]
    %v92 = vld [vmem:[#allocation4 + $0x40] sm:$0xf]
    %v93 = vld [vmem:[#allocation4 + $0x44] sm:$0xf]
    %v94 = vld [vmem:[#allocation4 + $0x48] sm:$0xf]
    %v95 = vld [vmem:[#allocation4 + $0x4c] sm:$0xf]
    %v96 = vld [vmem:[#allocation4 + $0x50] sm:$0xf]
    %v97 = vld [vmem:[#allocation4 + $0x54] sm:$0xf]
    %v98 = vld [vmem:[#allocation4 + $0x58] sm:$0xf]
    %v99 = vld [vmem:[#allocation4 + $0x5c] sm:$0xf]
    %v100 = vld [vmem:[#allocation4 + $0x60] sm:$0xf]
    %v101 = vld [vmem:[#allocation4 + $0x64] sm:$0xf]
    %v102 = vld [vmem:[#allocation9] sm:$0xf]
    %v103 = vld [vmem:[#allocation9 + $0x4] sm:$0xf]
    %v104 = vld [vmem:[#allocation9 + $0x8] sm:$0xf]
    %v105 = vld [vmem:[#allocation9 + $0xc] sm:$0xf]
    %v106 = vld [vmem:[#allocation9 + $0x10] sm:$0xf]
    %v107 = vld [vmem:[#allocation9 + $0x14] sm:$0xf]
    %v108 = vld [vmem:[#allocation9 + $0x18] sm:$0xf]
    %v109 = vld [vmem:[#allocation9 + $0x1c] sm:$0xf]
    %v110 = vld [vmem:[#allocation9 + $0x20] sm:$0xf]
    %v111 = vld [vmem:[#allocation9 + $0x24] sm:$0xf]
    %v112 = vld [vmem:[#allocation9 + $0x28] sm:$0xf]
    %v113 = vld [vmem:[#allocation9 + $0x2c] sm:$0xf]
    %v114 = vld [vmem:[#allocation9 + $0x30] sm:$0xf]
    %v115 = vld [vmem:[#allocation9 + $0x34] sm:$0xf]
    %v116 = vld [vmem:[#allocation9 + $0x38] sm:$0xf]
    %v117 = vld [vmem:[#allocation9 + $0x3c] sm:$0xf]
    %v144 = vunpack.c.l.b16 %v76
    %v145 = vunpack.c.l.b16 %v77
    %v146 = vunpack.c.l.b16 %v78
    %v147 = vunpack.c.l.b16 %v79
    %v148 = vunpack.c.l.b16 %v80
    %v149 = vunpack.c.l.b16 %v81
    %v150 = vunpack.c.l.b16 %v82
    %v151 = vunpack.c.l.b16 %v83
    %v152 = vunpack.c.l.b16 %v84
    %v153 = vunpack.c.l.b16 %v85
    %v154 = vunpack.c.l.b16 %v86
    %v155 = vunpack.c.l.b16 %v87
    %v156 = vunpack.c.l.b16 %v88
    %v157 = vunpack.c.l.b16 %v89
    %v158 = vunpack.c.l.b16 %v90
    %v159 = vunpack.c.l.b16 %v91
    %v160 = vunpack.c.l.b16 %v92
    %v161 = vunpack.c.l.b16 %v93
    %v162 = vunpack.c.l.b16 %v94
    %v163 = vunpack.c.l.b16 %v95
    %v164 = vunpack.c.l.b16 %v96
    %v165 = vunpack.c.l.b16 %v97
    %v166 = vunpack.c.l.b16 %v98
    %v167 = vunpack.c.l.b16 %v99
    %v168 = vunpack.c.l.b16 %v100
    %v169 = vunpack.c.l.b16 %v101
    %v170 = vpack.c.b16 %v145, %v144
    %v171 = vpack.c.b16 %v147, %v146
    %v172 = vpack.c.b16 %v149, %v148
    %v173 = vpack.c.b16 %v151, %v150
    %v174 = vpack.c.b16 %v153, %v152
    %v175 = vpack.c.b16 %v155, %v154
    %v176 = vpack.c.b16 %v157, %v156
    %v177 = vpack.c.b16 %v159, %v158
    %v178 = vpack.c.b16 %v161, %v160
    %v179 = vpack.c.b16 %v163, %v162
    %v180 = vpack.c.b16 %v165, %v164
    %v181 = vpack.c.b16 %v167, %v166
    %v182 = vpack.c.b16 %v169, %v168
    %v212 = vunpack.c.l.b16 %v102
    %v213 = vunpack.c.l.b16 %v103
    %v214 = vunpack.c.l.b16 %v104
    %v215 = vunpack.c.l.b16 %v105
    %v216 = vunpack.c.l.b16 %v106
    %v217 = vunpack.c.l.b16 %v107
    %v218 = vunpack.c.l.b16 %v108
    %v219 = vunpack.c.l.b16 %v109
    %v220 = vunpack.c.l.b16 %v110
    %v221 = vunpack.c.l.b16 %v111
    %v222 = vunpack.c.l.b16 %v112
    %v223 = vunpack.c.l.b16 %v113
    %v224 = vunpack.c.l.b16 %v114
    %v225 = vunpack.c.l.b16 %v115
    %v226 = vunpack.c.l.b16 %v116
    %v227 = vunpack.c.l.b16 %v117
    %v228 = vpack.c.b16 %v213, %v212
    %v229 = vpack.c.b16 %v215, %v214
    %v230 = vpack.c.b16 %v217, %v216
    %v231 = vpack.c.b16 %v219, %v218
    %v232 = vpack.c.b16 %v221, %v220
    %v233 = vpack.c.b16 %v223, %v222
    %v234 = vpack.c.b16 %v225, %v224
    %v235 = vpack.c.b16 %v227, %v226
    %244 = vmatprep.subr.bf16.mxu0 0
    %245 = vmatpush1.bf16.msra.mxu0 %v228
    %246 = vmatprep.subr.bf16.mxu0 0
    %247 = vmatpush1.bf16.msra.mxu0 %v229
    %248 = vmatprep.subr.bf16.mxu0 0
    %249 = vmatpush1.bf16.msra.mxu0 %v230
    %250 = vmatprep.subr.bf16.mxu0 0
    %251 = vmatpush1.bf16.msra.mxu0 %v231
    %252 = vmatprep.subr.bf16.mxu0 0
    %253 = vmatpush1.bf16.msra.mxu0 %v232
    %254 = vmatprep.subr.bf16.mxu0 0
    %255 = vmatpush1.bf16.msra.mxu0 %v233
    %256 = vmatprep.subr.bf16.mxu0 0
    %257 = vmatpush1.bf16.msra.mxu0 %v234
    %258 = vmatprep.subr.bf16.mxu0 0
    %259 = vmatpush1.bf16.msra.mxu0 %v235
    %260 = vmatprep.subr.bf16.mxu0 0
    %261 = vmatpush1.bf16.msra.mxu0 0
    %262 = vmatprep.subr.bf16.mxu0 0
    %263 = vmatpush1.bf16.msra.mxu0 0
    %264 = vmatprep.subr.bf16.mxu0 0
    %265 = vmatpush1.bf16.msra.mxu0 0
    %266 = vmatprep.subr.bf16.mxu0 0
    %267 = vmatpush1.bf16.msra.mxu0 0
    %268 = vmatprep.subr.bf16.mxu0 0
    %269 = vmatpush1.bf16.msra.mxu0 0
    %270 = vmatprep.subr.bf16.mxu0 0
    %271 = vmatpush1.bf16.msra.mxu0 0
    %272 = vmatprep.subr.bf16.mxu0 0
    %273 = vmatpush1.bf16.msra.mxu0 0
    %274 = vmatprep.subr.bf16.mxu0 0
    %275 = vmatpush1.bf16.msra.mxu0 0
    %276 = vmatprep.mubr.bf16.mxu0 0
    %277 = vmatmul.mubr.bf16.gmra.mrb[0].mxu0 %v170
    %v278 = vpop.f32.mrb[0].mxu0
    %v279 = vadd.f32 0.0, %v278
    %v280 = vpop.f32.mrb[0].mxu0
    %v281 = vpop.f32.mrb[0].mxu0
    %v282 = vadd.f32 0.0, %v281
    %v283 = vpop.f32.mrb[0].mxu0
    %284 = vmatprep.mubr.bf16.mxu0 0
    %285 = vmatmul.mubr.bf16.gmra.mrb[0].mxu0 %v171
    %v286 = vpop.f32.mrb[0].mxu0
    %v287 = vadd.f32 0.0, %v286
    %v288 = vpop.f32.mrb[0].mxu0
    %v289 = vpop.f32.mrb[0].mxu0
    %v290 = vadd.f32 0.0, %v289
    %v291 = vpop.f32.mrb[0].mxu0
    %292 = vmatprep.mubr.bf16.mxu0 0
    %293 = vmatmul.mubr.bf16.gmra.mrb[0].mxu0 %v172
    %v294 = vpop.f32.mrb[0].mxu0
    %v295 = vadd.f32 0.0, %v294
    %v296 = vpop.f32.mrb[0].mxu0
    %v297 = vpop.f32.mrb[0].mxu0
    %v298 = vadd.f32 0.0, %v297
    %v299 = vpop.f32.mrb[0].mxu0
    %300 = vmatprep.mubr.bf16.mxu0 0
    %301 = vmatmul.mubr.bf16.gmra.mrb[0].mxu0 %v173
    %v302 = vpop.f32.mrb[0].mxu0
    %v303 = vadd.f32 0.0, %v302
    %v304 = vpop.f32.mrb[0].mxu0
    %v305 = vpop.f32.mrb[0].mxu0
    %v306 = vadd.f32 0.0, %v305
    %v307 = vpop.f32.mrb[0].mxu0
    %308 = vmatprep.mubr.bf16.mxu0 0
    %309 = vmatmul.mubr.bf16.gmra.mrb[0].mxu0 %v174
    %v310 = vpop.f32.mrb[0].mxu0
    %v311 = vadd.f32 0.0, %v310
    %v312 = vpop.f32.mrb[0].mxu0
    %v313 = vpop.f32.mrb[0].mxu0
    %v314 = vadd.f32 0.0, %v313
    %v315 = vpop.f32.mrb[0].mxu0
    %316 = vmatprep.mubr.bf16.mxu0 0
    %317 = vmatmul.mubr.bf16.gmra.mrb[0].mxu0 %v175
    %v318 = vpop.f32.mrb[0].mxu0
    %v319 = vadd.f32 0.0, %v318
    %v320 = vpop.f32.mrb[0].mxu0
    %v321 = vpop.f32.mrb[0].mxu0
    %v322 = vadd.f32 0.0, %v321
    %v323 = vpop.f32.mrb[0].mxu0
    %324 = vmatprep.mubr.bf16.mxu0 0
    %325 = vmatmul.mubr.bf16.gmra.mrb[0].mxu0 %v176
    %v326 = vpop.f32.mrb[0].mxu0
    %v327 = vadd.f32 0.0, %v326
    %v328 = vpop.f32.mrb[0].mxu0
    %v329 = vpop.f32.mrb[0].mxu0
    %v330 = vadd.f32 0.0, %v329
    %v331 = vpop.f32.mrb[0].mxu0
    %332 = vmatprep.mubr.bf16.mxu0 0
    %333 = vmatmul.mubr.bf16.gmra.mrb[0].mxu0 %v177
    %v334 = vpop.f32.mrb[0].mxu0
    %v335 = vadd.f32 0.0, %v334
    %v336 = vpop.f32.mrb[0].mxu0
    %v337 = vpop.f32.mrb[0].mxu0
    %v338 = vadd.f32 0.0, %v337
    %v339 = vpop.f32.mrb[0].mxu0
    %340 = vmatprep.mubr.bf16.mxu0 0
    %341 = vmatmul.mubr.bf16.gmra.mrb[0].mxu0 %v178
    %v342 = vpop.f32.mrb[0].mxu0
    %v343 = vadd.f32 0.0, %v342
    %v344 = vpop.f32.mrb[0].mxu0
    %v345 = vpop.f32.mrb[0].mxu0
    %v346 = vadd.f32 0.0, %v345
    %v347 = vpop.f32.mrb[0].mxu0
    %348 = vmatprep.mubr.bf16.mxu0 0
    %349 = vmatmul.mubr.bf16.gmra.mrb[0].mxu0 %v179
    %v350 = vpop.f32.mrb[0].mxu0
    %v351 = vadd.f32 0.0, %v350
    %v352 = vpop.f32.mrb[0].mxu0
    %v353 = vpop.f32.mrb[0].mxu0
    %v354 = vadd.f32 0.0, %v353
    %v355 = vpop.f32.mrb[0].mxu0
    %356 = vmatprep.mubr.bf16.mxu0 0
    %357 = vmatmul.mubr.bf16.gmra.mrb[0].mxu0 %v180
    %v358 = vpop.f32.mrb[0].mxu0
    %v359 = vadd.f32 0.0, %v358
    %v360 = vpop.f32.mrb[0].mxu0
    %v361 = vpop.f32.mrb[0].mxu0
    %v362 = vadd.f32 0.0, %v361
    %v363 = vpop.f32.mrb[0].mxu0
    %364 = vmatprep.mubr.bf16.mxu0 0
    %365 = vmatmul.mubr.bf16.gmra.mrb[0].mxu0 %v181
    %v366 = vpop.f32.mrb[0].mxu0
    %v367 = vadd.f32 0.0, %v366
    %v368 = vpop.f32.mrb[0].mxu0
    %v369 = vpop.f32.mrb[0].mxu0
    %v370 = vadd.f32 0.0, %v369
    %v371 = vpop.f32.mrb[0].mxu0
    %372 = vmatprep.mubr.bf16.mxu0 0
    %373 = vmatmul.mubr.bf16.gmra.mrb[0].mxu0 %v182
    %v374 = vpop.f32.mrb[0].mxu0
    %v375 = vadd.f32 0.0, %v374
    %v376 = vpop.f32.mrb[0].mxu0
    %v377 = vpop.f32.mrb[0].mxu0
    %v378 = vadd.f32 0.0, %v377
    %v379 = vpop.f32.mrb[0].mxu0
    %380 = vdwg.mxu0
    %v381 = vld [vmem:[#allocation7] sm:$0xf]
    %v382 = vld [vmem:[#allocation7 + $0x4] sm:$0xf]
    %v383 = vld [vmem:[#allocation7 + $0x8] sm:$0xf]
    %v384 = vld [vmem:[#allocation7 + $0xc] sm:$0xf]
    %v385 = vld [vmem:[#allocation7 + $0x10] sm:$0xf]
    %v386 = vld [vmem:[#allocation7 + $0x14] sm:$0xf]
    %v387 = vld [vmem:[#allocation7 + $0x18] sm:$0xf]
    %v388 = vld [vmem:[#allocation7 + $0x1c] sm:$0xf]
    %v389 = vld [vmem:[#allocation7 + $0x20] sm:$0xf]
    %v390 = vld [vmem:[#allocation7 + $0x24] sm:$0xf]
    %v391 = vld [vmem:[#allocation7 + $0x28] sm:$0xf]
    %v392 = vld [vmem:[#allocation7 + $0x2c] sm:$0xf]
    %v393 = vld [vmem:[#allocation7 + $0x30] sm:$0xf]
    %v394 = vld [vmem:[#allocation7 + $0x34] sm:$0xf]
    %v395 = vld [vmem:[#allocation7 + $0x38] sm:$0xf]
    %v396 = vld [vmem:[#allocation7 + $0x3c] sm:$0xf]
    %v397 = vld [vmem:[#allocation7 + $0x40] sm:$0xf]
    %v398 = vld [vmem:[#allocation7 + $0x44] sm:$0xf]
    %v399 = vld [vmem:[#allocation7 + $0x48] sm:$0xf]
    %v400 = vld [vmem:[#allocation7 + $0x4c] sm:$0xf]
    %v401 = vld [vmem:[#allocation7 + $0x50] sm:$0xf]
    %v402 = vld [vmem:[#allocation7 + $0x54] sm:$0xf]
    %v403 = vld [vmem:[#allocation7 + $0x58] sm:$0xf]
    %v404 = vld [vmem:[#allocation7 + $0x5c] sm:$0xf]
    %v405 = vld [vmem:[#allocation7 + $0x60] sm:$0xf]
    %v406 = vld [vmem:[#allocation7 + $0x64] sm:$0xf]
    %v407 = vld [vmem:[#allocation10] sm:$0xf]
    %v408 = vld [vmem:[#allocation10 + $0x4] sm:$0xf]
    %v409 = vld [vmem:[#allocation10 + $0x8] sm:$0xf]
    %v410 = vld [vmem:[#allocation10 + $0xc] sm:$0xf]
    %v411 = vld [vmem:[#allocation10 + $0x10] sm:$0xf]
    %v412 = vld [vmem:[#allocation10 + $0x14] sm:$0xf]
    %v413 = vld [vmem:[#allocation10 + $0x18] sm:$0xf]
    %v414 = vld [vmem:[#allocation10 + $0x1c] sm:$0xf]
    %v415 = vld [vmem:[#allocation10 + $0x20] sm:$0xf]
    %v416 = vld [vmem:[#allocation10 + $0x24] sm:$0xf]
    %v417 = vld [vmem:[#allocation10 + $0x28] sm:$0xf]
    %v418 = vld [vmem:[#allocation10 + $0x2c] sm:$0xf]
    %v419 = vld [vmem:[#allocation10 + $0x30] sm:$0xf]
    %v420 = vld [vmem:[#allocation10 + $0x34] sm:$0xf]
    %v421 = vld [vmem:[#allocation10 + $0x38] sm:$0xf]
    %v422 = vld [vmem:[#allocation10 + $0x3c] sm:$0xf]
    %v449 = vunpack.c.l.b16 %v381
    %v450 = vunpack.c.l.b16 %v382
    %v451 = vunpack.c.l.b16 %v383
    %v452 = vunpack.c.l.b16 %v384
    %v453 = vunpack.c.l.b16 %v385
    %v454 = vunpack.c.l.b16 %v386
    %v455 = vunpack.c.l.b16 %v387
    %v456 = vunpack.c.l.b16 %v388
    %v457 = vunpack.c.l.b16 %v389
    %v458 = vunpack.c.l.b16 %v390
    %v459 = vunpack.c.l.b16 %v391
    %v460 = vunpack.c.l.b16 %v392
    %v461 = vunpack.c.l.b16 %v393
    %v462 = vunpack.c.l.b16 %v394
    %v463 = vunpack.c.l.b16 %v395
    %v464 = vunpack.c.l.b16 %v396
    %v465 = vunpack.c.l.b16 %v397
    %v466 = vunpack.c.l.b16 %v398
    %v467 = vunpack.c.l.b16 %v399
    %v468 = vunpack.c.l.b16 %v400
    %v469 = vunpack.c.l.b16 %v401
    %v470 = vunpack.c.l.b16 %v402
    %v471 = vunpack.c.l.b16 %v403
    %v472 = vunpack.c.l.b16 %v404
    %v473 = vunpack.c.l.b16 %v405
    %v474 = vunpack.c.l.b16 %v406
    %v475 = vpack.c.b16 %v450, %v449
    %v476 = vpack.c.b16 %v452, %v451
    %v477 = vpack.c.b16 %v454, %v453
    %v478 = vpack.c.b16 %v456, %v455
    %v479 = vpack.c.b16 %v458, %v457
    %v480 = vpack.c.b16 %v460, %v459
    %v481 = vpack.c.b16 %v462, %v461
    %v482 = vpack.c.b16 %v464, %v463
    %v483 = vpack.c.b16 %v466, %v465
    %v484 = vpack.c.b16 %v468, %v467
    %v485 = vpack.c.b16 %v470, %v469
    %v486 = vpack.c.b16 %v472, %v471
    %v487 = vpack.c.b16 %v474, %v473
    %v517 = vunpack.c.l.b16 %v407
    %v518 = vunpack.c.l.b16 %v408
    %v519 = vunpack.c.l.b16 %v409
    %v520 = vunpack.c.l.b16 %v410
    %v521 = vunpack.c.l.b16 %v411
    %v522 = vunpack.c.l.b16 %v412
    %v523 = vunpack.c.l.b16 %v413
    %v524 = vunpack.c.l.b16 %v414
    %v525 = vunpack.c.l.b16 %v415
    %v526 = vunpack.c.l.b16 %v416
    %v527 = vunpack.c.l.b16 %v417
    %v528 = vunpack.c.l.b16 %v418
    %v529 = vunpack.c.l.b16 %v419
    %v530 = vunpack.c.l.b16 %v420
    %v531 = vunpack.c.l.b16 %v421
    %v532 = vunpack.c.l.b16 %v422
    %v533 = vpack.c.b16 %v518, %v517
    %v534 = vpack.c.b16 %v520, %v519
    %v535 = vpack.c.b16 %v522, %v521
    %v536 = vpack.c.b16 %v524, %v523
    %v537 = vpack.c.b16 %v526, %v525
    %v538 = vpack.c.b16 %v528, %v527
    %v539 = vpack.c.b16 %v530, %v529
    %v540 = vpack.c.b16 %v532, %v531
    %549 = vmatprep.subr.bf16.mxu0 0
    %550 = vmatpush1.bf16.msra.mxu0 %v533
    %551 = vmatprep.subr.bf16.mxu0 0
    %552 = vmatpush1.bf16.msra.mxu0 %v534
    %553 = vmatprep.subr.bf16.mxu0 0
    %554 = vmatpush1.bf16.msra.mxu0 %v535
    %555 = vmatprep.subr.bf16.mxu0 0
    %556 = vmatpush1.bf16.msra.mxu0 %v536
    %557 = vmatprep.subr.bf16.mxu0 0
    %558 = vmatpush1.bf16.msra.mxu0 %v537
    %559 = vmatprep.subr.bf16.mxu0 0
    %560 = vmatpush1.bf16.msra.mxu0 %v538
    %561 = vmatprep.subr.bf16.mxu0 0
    %562 = vmatpush1.bf16.msra.mxu0 %v539
    %563 = vmatprep.subr.bf16.mxu0 0
    %564 = vmatpush1.bf16.msra.mxu0 %v540
    %565 = vmatprep.subr.bf16.mxu0 0
    %566 = vmatpush1.bf16.msra.mxu0 0
    %567 = vmatprep.subr.bf16.mxu0 0
    %568 = vmatpush1.bf16.msra.mxu0 0
    %569 = vmatprep.subr.bf16.mxu0 0
    %570 = vmatpush1.bf16.msra.mxu0 0
    %571 = vmatprep.subr.bf16.mxu0 0
    %572 = vmatpush1.bf16.msra.mxu0 0
    %573 = vmatprep.subr.bf16.mxu0 0
    %574 = vmatpush1.bf16.msra.mxu0 0
    %575 = vmatprep.subr.bf16.mxu0 0
    %576 = vmatpush1.bf16.msra.mxu0 0
    %577 = vmatprep.subr.bf16.mxu0 0
    %578 = vmatpush1.bf16.msra.mxu0 0
    %579 = vmatprep.subr.bf16.mxu0 0
    %580 = vmatpush1.bf16.msra.mxu0 0
    %581 = vmatprep.mubr.bf16.mxu0 0
    %582 = vmatmul.mubr.bf16.gmra.mrb[0].mxu0 %v475
    %v583 = vpop.f32.mrb[0].mxu0
    %v584 = vadd.f32 0.0, %v583
    %v585 = vpop.f32.mrb[0].mxu0
    %v586 = vpop.f32.mrb[0].mxu0
    %v587 = vadd.f32 0.0, %v586
    %v588 = vpop.f32.mrb[0].mxu0
    %589 = vmatprep.mubr.bf16.mxu0 0
    %590 = vmatmul.mubr.bf16.gmra.mrb[0].mxu0 %v476
    %v591 = vpop.f32.mrb[0].mxu0
    %v592 = vadd.f32 0.0, %v591
    %v593 = vpop.f32.mrb[0].mxu0
    %v594 = vpop.f32.mrb[0].mxu0
    %v595 = vadd.f32 0.0, %v594
    %v596 = vpop.f32.mrb[0].mxu0
    %597 = vmatprep.mubr.bf16.mxu0 0
    %598 = vmatmul.mubr.bf16.gmra.mrb[0].mxu0 %v477
    %v599 = vpop.f32.mrb[0].mxu0
    %v600 = vadd.f32 0.0, %v599
    %v601 = vpop.f32.mrb[0].mxu0
    %v602 = vpop.f32.mrb[0].mxu0
    %v603 = vadd.f32 0.0, %v602
    %v604 = vpop.f32.mrb[0].mxu0
    %605 = vmatprep.mubr.bf16.mxu0 0
    %606 = vmatmul.mubr.bf16.gmra.mrb[0].mxu0 %v478
    %v607 = vpop.f32.mrb[0].mxu0
    %v608 = vadd.f32 0.0, %v607
    %v609 = vpop.f32.mrb[0].mxu0
    %v610 = vpop.f32.mrb[0].mxu0
    %v611 = vadd.f32 0.0, %v610
    %v612 = vpop.f32.mrb[0].mxu0
    %613 = vmatprep.mubr.bf16.mxu0 0
    %614 = vmatmul.mubr.bf16.gmra.mrb[0].mxu0 %v479
    %v615 = vpop.f32.mrb[0].mxu0
    %v616 = vadd.f32 0.0, %v615
    %v617 = vpop.f32.mrb[0].mxu0
    %v618 = vpop.f32.mrb[0].mxu0
    %v619 = vadd.f32 0.0, %v618
    %v620 = vpop.f32.mrb[0].mxu0
    %621 = vmatprep.mubr.bf16.mxu0 0
    %622 = vmatmul.mubr.bf16.gmra.mrb[0].mxu0 %v480
    %v623 = vpop.f32.mrb[0].mxu0
    %v624 = vadd.f32 0.0, %v623
    %v625 = vpop.f32.mrb[0].mxu0
    %v626 = vpop.f32.mrb[0].mxu0
    %v627 = vadd.f32 0.0, %v626
    %v628 = vpop.f32.mrb[0].mxu0
    %629 = vmatprep.mubr.bf16.mxu0 0
    %630 = vmatmul.mubr.bf16.gmra.mrb[0].mxu0 %v481
    %v631 = vpop.f32.mrb[0].mxu0
    %v632 = vadd.f32 0.0, %v631
    %v633 = vpop.f32.mrb[0].mxu0
    %v634 = vpop.f32.mrb[0].mxu0
    %v635 = vadd.f32 0.0, %v634
    %v636 = vpop.f32.mrb[0].mxu0
    %637 = vmatprep.mubr.bf16.mxu0 0
    %638 = vmatmul.mubr.bf16.gmra.mrb[0].mxu0 %v482
    %v639 = vpop.f32.mrb[0].mxu0
    %v640 = vadd.f32 0.0, %v639
    %v641 = vpop.f32.mrb[0].mxu0
    %v642 = vpop.f32.mrb[0].mxu0
    %v643 = vadd.f32 0.0, %v642
    %v644 = vpop.f32.mrb[0].mxu0
    %645 = vmatprep.mubr.bf16.mxu0 0
    %646 = vmatmul.mubr.bf16.gmra.mrb[0].mxu0 %v483
    %v647 = vpop.f32.mrb[0].mxu0
    %v648 = vadd.f32 0.0, %v647
    %v649 = vpop.f32.mrb[0].mxu0
    %v650 = vpop.f32.mrb[0].mxu0
    %v651 = vadd.f32 0.0, %v650
    %v652 = vpop.f32.mrb[0].mxu0
    %653 = vmatprep.mubr.bf16.mxu0 0
    %654 = vmatmul.mubr.bf16.gmra.mrb[0].mxu0 %v484
    %v655 = vpop.f32.mrb[0].mxu0
    %v656 = vadd.f32 0.0, %v655
    %v657 = vpop.f32.mrb[0].mxu0
    %v658 = vpop.f32.mrb[0].mxu0
    %v659 = vadd.f32 0.0, %v658
    %v660 = vpop.f32.mrb[0].mxu0
    %661 = vmatprep.mubr.bf16.mxu0 0
    %662 = vmatmul.mubr.bf16.gmra.mrb[0].mxu0 %v485
    %v663 = vpop.f32.mrb[0].mxu0
    %v664 = vadd.f32 0.0, %v663
    %v665 = vpop.f32.mrb[0].mxu0
    %v666 = vpop.f32.mrb[0].mxu0
    %v667 = vadd.f32 0.0, %v666
    %v668 = vpop.f32.mrb[0].mxu0
    %669 = vmatprep.mubr.bf16.mxu0 0
    %670 = vmatmul.mubr.bf16.gmra.mrb[0].mxu0 %v486
    %v671 = vpop.f32.mrb[0].mxu0
    %v672 = vadd.f32 0.0, %v671
    %v673 = vpop.f32.mrb[0].mxu0
    %v674 = vpop.f32.mrb[0].mxu0
    %v675 = vadd.f32 0.0, %v674
    %v676 = vpop.f32.mrb[0].mxu0
    %677 = vmatprep.mubr.bf16.mxu0 0
    %678 = vmatmul.mubr.bf16.gmra.mrb[0].mxu0 %v487
    %v679 = vpop.f32.mrb[0].mxu0
    %v680 = vadd.f32 0.0, %v679
    %v681 = vpop.f32.mrb[0].mxu0
    %v682 = vpop.f32.mrb[0].mxu0
    %v683 = vadd.f32 0.0, %v682
    %v684 = vpop.f32.mrb[0].mxu0
    %685 = vdwg.mxu0
    %v686 = vmul.f32 %v279, %v584
    %v687 = vmul.f32 %v282, %v587
    %v688 = vmul.f32 %v287, %v592
    %v689 = vmul.f32 %v290, %v595
    %v690 = vmul.f32 %v295, %v600
    %v691 = vmul.f32 %v298, %v603
    %v692 = vmul.f32 %v303, %v608
    %v693 = vmul.f32 %v306, %v611
    %v694 = vmul.f32 %v311, %v616
    %v695 = vmul.f32 %v314, %v619
    %v696 = vmul.f32 %v319, %v624
    %v697 = vmul.f32 %v322, %v627
    %v698 = vmul.f32 %v327, %v632
    %v699 = vmul.f32 %v330, %v635
    %v700 = vmul.f32 %v335, %v640
    %v701 = vmul.f32 %v338, %v643
    %v702 = vmul.f32 %v343, %v648
    %v703 = vmul.f32 %v346, %v651
    %v704 = vmul.f32 %v351, %v656
    %v705 = vmul.f32 %v354, %v659
    %v706 = vmul.f32 %v359, %v664
    %v707 = vmul.f32 %v362, %v667
    %v708 = vmul.f32 %v367, %v672
    %v709 = vmul.f32 %v370, %v675
    %v710 = vmul.f32 %v375, %v680
    %v711 = vmul.f32 %v378, %v683
    %712 = vadd.xlane.f32.xlu0 %v686
    %v713 = vpop.xlane.xlu0 %712
    %714 = vadd.xlane.f32.xlu0 %v687
    %v715 = vpop.xlane.xlu0 %714
    %716 = vadd.xlane.f32.xlu0 %v688
    %v717 = vpop.xlane.xlu0 %716
    %718 = vadd.xlane.f32.xlu0 %v689
    %v719 = vpop.xlane.xlu0 %718
    %720 = vadd.xlane.f32.xlu0 %v690
    %v721 = vpop.xlane.xlu0 %720
    %722 = vadd.xlane.f32.xlu0 %v691
    %v723 = vpop.xlane.xlu0 %722
    %724 = vadd.xlane.f32.xlu0 %v692
    %v725 = vpop.xlane.xlu0 %724
    %726 = vadd.xlane.f32.xlu0 %v693
    %v727 = vpop.xlane.xlu0 %726
    %728 = vadd.xlane.f32.xlu0 %v694
    %v729 = vpop.xlane.xlu0 %728
    %730 = vadd.xlane.f32.xlu0 %v695
    %v731 = vpop.xlane.xlu0 %730
    %732 = vadd.xlane.f32.xlu0 %v696
    %v733 = vpop.xlane.xlu0 %732
    %734 = vadd.xlane.f32.xlu0 %v697
    %v735 = vpop.xlane.xlu0 %734
    %736 = vadd.xlane.f32.xlu0 %v698
    %v737 = vpop.xlane.xlu0 %736
    %738 = vadd.xlane.f32.xlu0 %v699
    %v739 = vpop.xlane.xlu0 %738
    %740 = vadd.xlane.f32.xlu0 %v700
    %v741 = vpop.xlane.xlu0 %740
    %742 = vadd.xlane.f32.xlu0 %v701
    %v743 = vpop.xlane.xlu0 %742
    %744 = vadd.xlane.f32.xlu0 %v702
    %v745 = vpop.xlane.xlu0 %744
    %746 = vadd.xlane.f32.xlu0 %v703
    %v747 = vpop.xlane.xlu0 %746
    %748 = vadd.xlane.f32.xlu0 %v704
    %v749 = vpop.xlane.xlu0 %748
    %750 = vadd.xlane.f32.xlu0 %v705
    %v751 = vpop.xlane.xlu0 %750
    %752 = vadd.xlane.f32.xlu0 %v706
    %v753 = vpop.xlane.xlu0 %752
    %754 = vadd.xlane.f32.xlu0 %v707
    %v755 = vpop.xlane.xlu0 %754
    %756 = vadd.xlane.f32.xlu0 %v708
    %v757 = vpop.xlane.xlu0 %756
    %758 = vadd.xlane.f32.xlu0 %v709
    %v759 = vpop.xlane.xlu0 %758
    %760 = vadd.xlane.f32.xlu0 %v710
    %v761 = vpop.xlane.xlu0 %760
    %762 = vadd.xlane.f32.xlu0 %v711
    %v763 = vpop.xlane.xlu0 %762
    %v764 = vmul.f32 %v279, %v279
    %v765 = vmul.f32 %v282, %v282
    %v766 = vmul.f32 %v287, %v287
    %v767 = vmul.f32 %v290, %v290
    %v768 = vmul.f32 %v295, %v295
    %v769 = vmul.f32 %v298, %v298
    %v770 = vmul.f32 %v303, %v303
    %v771 = vmul.f32 %v306, %v306
    %v772 = vmul.f32 %v311, %v311
    %v773 = vmul.f32 %v314, %v314
    %v774 = vmul.f32 %v319, %v319
    %v775 = vmul.f32 %v322, %v322
    %v776 = vmul.f32 %v327, %v327
    %v777 = vmul.f32 %v330, %v330
    %v778 = vmul.f32 %v335, %v335
    %v779 = vmul.f32 %v338, %v338
    %v780 = vmul.f32 %v343, %v343
    %v781 = vmul.f32 %v346, %v346
    %v782 = vmul.f32 %v351, %v351
    %v783 = vmul.f32 %v354, %v354
    %v784 = vmul.f32 %v359, %v359
    %v785 = vmul.f32 %v362, %v362
    %v786 = vmul.f32 %v367, %v367
    %v787 = vmul.f32 %v370, %v370
    %v788 = vmul.f32 %v375, %v375
    %v789 = vmul.f32 %v378, %v378
    %790 = vadd.xlane.f32.xlu0 %v764
    %v791 = vpop.xlane.xlu0 %790
    %792 = vadd.xlane.f32.xlu0 %v765
    %v793 = vpop.xlane.xlu0 %792
    %794 = vadd.xlane.f32.xlu0 %v766
    %v795 = vpop.xlane.xlu0 %794
    %796 = vadd.xlane.f32.xlu0 %v767
    %v797 = vpop.xlane.xlu0 %796
    %798 = vadd.xlane.f32.xlu0 %v768
    %v799 = vpop.xlane.xlu0 %798
    %800 = vadd.xlane.f32.xlu0 %v769
    %v801 = vpop.xlane.xlu0 %800
    %802 = vadd.xlane.f32.xlu0 %v770
    %v803 = vpop.xlane.xlu0 %802
    %804 = vadd.xlane.f32.xlu0 %v771
    %v805 = vpop.xlane.xlu0 %804
    %806 = vadd.xlane.f32.xlu0 %v772
    %v807 = vpop.xlane.xlu0 %806
    %808 = vadd.xlane.f32.xlu0 %v773
    %v809 = vpop.xlane.xlu0 %808
    %810 = vadd.xlane.f32.xlu0 %v774
    %v811 = vpop.xlane.xlu0 %810
    %812 = vadd.xlane.f32.xlu0 %v775
    %v813 = vpop.xlane.xlu0 %812
    %814 = vadd.xlane.f32.xlu0 %v776
    %v815 = vpop.xlane.xlu0 %814
    %816 = vadd.xlane.f32.xlu0 %v777
    %v817 = vpop.xlane.xlu0 %816
    %818 = vadd.xlane.f32.xlu0 %v778
    %v819 = vpop.xlane.xlu0 %818
    %820 = vadd.xlane.f32.xlu0 %v779
    %v821 = vpop.xlane.xlu0 %820
    %822 = vadd.xlane.f32.xlu0 %v780
    %v823 = vpop.xlane.xlu0 %822
    %824 = vadd.xlane.f32.xlu0 %v781
    %v825 = vpop.xlane.xlu0 %824
    %826 = vadd.xlane.f32.xlu0 %v782
    %v827 = vpop.xlane.xlu0 %826
    %828 = vadd.xlane.f32.xlu0 %v783
    %v829 = vpop.xlane.xlu0 %828
    %830 = vadd.xlane.f32.xlu0 %v784
    %v831 = vpop.xlane.xlu0 %830
    %832 = vadd.xlane.f32.xlu0 %v785
    %v833 = vpop.xlane.xlu0 %832
    %834 = vadd.xlane.f32.xlu0 %v786
    %v835 = vpop.xlane.xlu0 %834
    %836 = vadd.xlane.f32.xlu0 %v787
    %v837 = vpop.xlane.xlu0 %836
    %838 = vadd.xlane.f32.xlu0 %v788
    %v839 = vpop.xlane.xlu0 %838
    %840 = vadd.xlane.f32.xlu0 %v789
    %v841 = vpop.xlane.xlu0 %840
    %v842 = vmul.f32 %v584, %v584
    %v843 = vmul.f32 %v587, %v587
    %v844 = vmul.f32 %v592, %v592
    %v845 = vmul.f32 %v595, %v595
    %v846 = vmul.f32 %v600, %v600
    %v847 = vmul.f32 %v603, %v603
    %v848 = vmul.f32 %v608, %v608
    %v849 = vmul.f32 %v611, %v611
    %v850 = vmul.f32 %v616, %v616
    %v851 = vmul.f32 %v619, %v619
    %v852 = vmul.f32 %v624, %v624
    %v853 = vmul.f32 %v627, %v627
    %v854 = vmul.f32 %v632, %v632
    %v855 = vmul.f32 %v635, %v635
    %v856 = vmul.f32 %v640, %v640
    %v857 = vmul.f32 %v643, %v643
    %v858 = vmul.f32 %v648, %v648
    %v859 = vmul.f32 %v651, %v651
    %v860 = vmul.f32 %v656, %v656
    %v861 = vmul.f32 %v659, %v659
    %v862 = vmul.f32 %v664, %v664
    %v863 = vmul.f32 %v667, %v667
    %v864 = vmul.f32 %v672, %v672
    %v865 = vmul.f32 %v675, %v675
    %v866 = vmul.f32 %v680, %v680
    %v867 = vmul.f32 %v683, %v683
    %868 = vadd.xlane.f32.xlu0 %v842
    %v869 = vpop.xlane.xlu0 %868
    %870 = vadd.xlane.f32.xlu0 %v843
    %v871 = vpop.xlane.xlu0 %870
    %872 = vadd.xlane.f32.xlu0 %v844
    %v873 = vpop.xlane.xlu0 %872
    %874 = vadd.xlane.f32.xlu0 %v845
    %v875 = vpop.xlane.xlu0 %874
    %876 = vadd.xlane.f32.xlu0 %v846
    %v877 = vpop.xlane.xlu0 %876
    %878 = vadd.xlane.f32.xlu0 %v847
    %v879 = vpop.xlane.xlu0 %878
    %880 = vadd.xlane.f32.xlu0 %v848
    %v881 = vpop.xlane.xlu0 %880
    %882 = vadd.xlane.f32.xlu0 %v849
    %v883 = vpop.xlane.xlu0 %882
    %884 = vadd.xlane.f32.xlu0 %v850
    %v885 = vpop.xlane.xlu0 %884
    %886 = vadd.xlane.f32.xlu0 %v851
    %v887 = vpop.xlane.xlu0 %886
    %888 = vadd.xlane.f32.xlu0 %v852
    %v889 = vpop.xlane.xlu0 %888
    %890 = vadd.xlane.f32.xlu0 %v853
    %v891 = vpop.xlane.xlu0 %890
    %892 = vadd.xlane.f32.xlu0 %v854
    %v893 = vpop.xlane.xlu0 %892
    %894 = vadd.xlane.f32.xlu0 %v855
    %v895 = vpop.xlane.xlu0 %894
    %896 = vadd.xlane.f32.xlu0 %v856
    %v897 = vpop.xlane.xlu0 %896
    %898 = vadd.xlane.f32.xlu0 %v857
    %v899 = vpop.xlane.xlu0 %898
    %900 = vadd.xlane.f32.xlu0 %v858
    %v901 = vpop.xlane.xlu0 %900
    %902 = vadd.xlane.f32.xlu0 %v859
    %v903 = vpop.xlane.xlu0 %902
    %904 = vadd.xlane.f32.xlu0 %v860
    %v905 = vpop.xlane.xlu0 %904
    %906 = vadd.xlane.f32.xlu0 %v861
    %v907 = vpop.xlane.xlu0 %906
    %908 = vadd.xlane.f32.xlu0 %v862
    %v909 = vpop.xlane.xlu0 %908
    %910 = vadd.xlane.f32.xlu0 %v863
    %v911 = vpop.xlane.xlu0 %910
    %912 = vadd.xlane.f32.xlu0 %v864
    %v913 = vpop.xlane.xlu0 %912
    %914 = vadd.xlane.f32.xlu0 %v865
    %v915 = vpop.xlane.xlu0 %914
    %916 = vadd.xlane.f32.xlu0 %v866
    %v917 = vpop.xlane.xlu0 %916
    %918 = vadd.xlane.f32.xlu0 %v867
    %v919 = vpop.xlane.xlu0 %918
    %v920 = vmax.f32 %v791, 1e-24
    %v921 = vmax.f32 %v793, 1e-24
    %v922 = vmax.f32 %v795, 1e-24
    %v923 = vmax.f32 %v797, 1e-24
    %v924 = vmax.f32 %v799, 1e-24
    %v925 = vmax.f32 %v801, 1e-24
    %v926 = vmax.f32 %v803, 1e-24
    %v927 = vmax.f32 %v805, 1e-24
    %v928 = vmax.f32 %v807, 1e-24
    %v929 = vmax.f32 %v809, 1e-24
    %v930 = vmax.f32 %v811, 1e-24
    %v931 = vmax.f32 %v813, 1e-24
    %v932 = vmax.f32 %v815, 1e-24
    %v933 = vmax.f32 %v817, 1e-24
    %v934 = vmax.f32 %v819, 1e-24
    %v935 = vmax.f32 %v821, 1e-24
    %v936 = vmax.f32 %v823, 1e-24
    %v937 = vmax.f32 %v825, 1e-24
    %v938 = vmax.f32 %v827, 1e-24
    %v939 = vmax.f32 %v829, 1e-24
    %v940 = vmax.f32 %v831, 1e-24
    %v941 = vmax.f32 %v833, 1e-24
    %v942 = vmax.f32 %v835, 1e-24
    %v943 = vmax.f32 %v837, 1e-24
    %v944 = vmax.f32 %v839, 1e-24
    %v945 = vmax.f32 %v841, 1e-24
    %v946 = vrsqrt.pop %v920
    %v947 = vrsqrt.pop %v921
    %v948 = vrsqrt.pop %v922
    %v949 = vrsqrt.pop %v923
    %v950 = vrsqrt.pop %v924
    %v951 = vrsqrt.pop %v925
    %v952 = vrsqrt.pop %v926
    %v953 = vrsqrt.pop %v927
    %v954 = vrsqrt.pop %v928
    %v955 = vrsqrt.pop %v929
    %v956 = vrsqrt.pop %v930
    %v957 = vrsqrt.pop %v931
    %v958 = vrsqrt.pop %v932
    %v959 = vrsqrt.pop %v933
    %v960 = vrsqrt.pop %v934
    %v961 = vrsqrt.pop %v935
    %v962 = vrsqrt.pop %v936
    %v963 = vrsqrt.pop %v937
    %v964 = vrsqrt.pop %v938
    %v965 = vrsqrt.pop %v939
    %v966 = vrsqrt.pop %v940
    %v967 = vrsqrt.pop %v941
    %v968 = vrsqrt.pop %v942
    %v969 = vrsqrt.pop %v943
    %v970 = vrsqrt.pop %v944
    %v971 = vrsqrt.pop %v945
    %v972 = vmax.f32 %v869, 1e-24
    %v973 = vmax.f32 %v871, 1e-24
    %v974 = vmax.f32 %v873, 1e-24
    %v975 = vmax.f32 %v875, 1e-24
    %v976 = vmax.f32 %v877, 1e-24
    %v977 = vmax.f32 %v879, 1e-24
    %v978 = vmax.f32 %v881, 1e-24
    %v979 = vmax.f32 %v883, 1e-24
    %v980 = vmax.f32 %v885, 1e-24
    %v981 = vmax.f32 %v887, 1e-24
    %v982 = vmax.f32 %v889, 1e-24
    %v983 = vmax.f32 %v891, 1e-24
    %v984 = vmax.f32 %v893, 1e-24
    %v985 = vmax.f32 %v895, 1e-24
    %v986 = vmax.f32 %v897, 1e-24
    %v987 = vmax.f32 %v899, 1e-24
    %v988 = vmax.f32 %v901, 1e-24
    %v989 = vmax.f32 %v903, 1e-24
    %v990 = vmax.f32 %v905, 1e-24
    %v991 = vmax.f32 %v907, 1e-24
    %v992 = vmax.f32 %v909, 1e-24
    %v993 = vmax.f32 %v911, 1e-24
    %v994 = vmax.f32 %v913, 1e-24
    %v995 = vmax.f32 %v915, 1e-24
    %v996 = vmax.f32 %v917, 1e-24
    %v997 = vmax.f32 %v919, 1e-24
    %v998 = vrsqrt.pop %v972
    %v999 = vrsqrt.pop %v973
    %v1000 = vrsqrt.pop %v974
    %v1001 = vrsqrt.pop %v975
    %v1002 = vrsqrt.pop %v976
    %v1003 = vrsqrt.pop %v977
    %v1004 = vrsqrt.pop %v978
    %v1005 = vrsqrt.pop %v979
    %v1006 = vrsqrt.pop %v980
    %v1007 = vrsqrt.pop %v981
    %v1008 = vrsqrt.pop %v982
    %v1009 = vrsqrt.pop %v983
    %v1010 = vrsqrt.pop %v984
    %v1011 = vrsqrt.pop %v985
    %v1012 = vrsqrt.pop %v986
    %v1013 = vrsqrt.pop %v987
    %v1014 = vrsqrt.pop %v988
    %v1015 = vrsqrt.pop %v989
    %v1016 = vrsqrt.pop %v990
    %v1017 = vrsqrt.pop %v991
    %v1018 = vrsqrt.pop %v992
    %v1019 = vrsqrt.pop %v993
    %v1020 = vrsqrt.pop %v994
    %v1021 = vrsqrt.pop %v995
    %v1022 = vrsqrt.pop %v996
    %v1023 = vrsqrt.pop %v997
    %v1024 = vmul.f32 %v946, %v998
    %v1025 = vmul.f32 %v947, %v999
    %v1026 = vmul.f32 %v948, %v1000
    %v1027 = vmul.f32 %v949, %v1001
    %v1028 = vmul.f32 %v950, %v1002
    %v1029 = vmul.f32 %v951, %v1003
    %v1030 = vmul.f32 %v952, %v1004
    %v1031 = vmul.f32 %v953, %v1005
    %v1032 = vmul.f32 %v954, %v1006
    %v1033 = vmul.f32 %v955, %v1007
    %v1034 = vmul.f32 %v956, %v1008
    %v1035 = vmul.f32 %v957, %v1009
    %v1036 = vmul.f32 %v958, %v1010
    %v1037 = vmul.f32 %v959, %v1011
    %v1038 = vmul.f32 %v960, %v1012
    %v1039 = vmul.f32 %v961, %v1013
    %v1040 = vmul.f32 %v962, %v1014
    %v1041 = vmul.f32 %v963, %v1015
    %v1042 = vmul.f32 %v964, %v1016
    %v1043 = vmul.f32 %v965, %v1017
    %v1044 = vmul.f32 %v966, %v1018
    %v1045 = vmul.f32 %v967, %v1019
    %v1046 = vmul.f32 %v968, %v1020
    %v1047 = vmul.f32 %v969, %v1021
    %v1048 = vmul.f32 %v970, %v1022
    %v1049 = vmul.f32 %v971, %v1023
    %v1050 = vmul.f32 %v713, %v1024
    %v1051 = vmul.f32 %v715, %v1025
    %v1052 = vmul.f32 %v717, %v1026
    %v1053 = vmul.f32 %v719, %v1027
    %v1054 = vmul.f32 %v721, %v1028
    %v1055 = vmul.f32 %v723, %v1029
    %v1056 = vmul.f32 %v725, %v1030
    %v1057 = vmul.f32 %v727, %v1031
    %v1058 = vmul.f32 %v729, %v1032
    %v1059 = vmul.f32 %v731, %v1033
    %v1060 = vmul.f32 %v733, %v1034
    %v1061 = vmul.f32 %v735, %v1035
    %v1062 = vmul.f32 %v737, %v1036
    %v1063 = vmul.f32 %v739, %v1037
    %v1064 = vmul.f32 %v741, %v1038
    %v1065 = vmul.f32 %v743, %v1039
    %v1066 = vmul.f32 %v745, %v1040
    %v1067 = vmul.f32 %v747, %v1041
    %v1068 = vmul.f32 %v749, %v1042
    %v1069 = vmul.f32 %v751, %v1043
    %v1070 = vmul.f32 %v753, %v1044
    %v1071 = vmul.f32 %v755, %v1045
    %v1072 = vmul.f32 %v757, %v1046
    %v1073 = vmul.f32 %v759, %v1047
    %v1074 = vmul.f32 %v761, %v1048
    %v1075 = vmul.f32 %v763, %v1049
    %s1076 = sld [smem:[#allocation3]]
    %v1077 = vstv %s1076
    %v1078 = vmul.f32 %v1050, %v1077
    %v1079 = vmul.f32 %v1051, %v1077
    %v1080 = vmul.f32 %v1052, %v1077
    %v1081 = vmul.f32 %v1053, %v1077
    %v1082 = vmul.f32 %v1054, %v1077
    %v1083 = vmul.f32 %v1055, %v1077
    %v1084 = vmul.f32 %v1056, %v1077
    %v1085 = vmul.f32 %v1057, %v1077
    %v1086 = vmul.f32 %v1058, %v1077
    %v1087 = vmul.f32 %v1059, %v1077
    %v1088 = vmul.f32 %v1060, %v1077
    %v1089 = vmul.f32 %v1061, %v1077
    %v1090 = vmul.f32 %v1062, %v1077
    %v1091 = vmul.f32 %v1063, %v1077
    %v1092 = vmul.f32 %v1064, %v1077
    %v1093 = vmul.f32 %v1065, %v1077
    %v1094 = vmul.f32 %v1066, %v1077
    %v1095 = vmul.f32 %v1067, %v1077
    %v1096 = vmul.f32 %v1068, %v1077
    %v1097 = vmul.f32 %v1069, %v1077
    %v1098 = vmul.f32 %v1070, %v1077
    %v1099 = vmul.f32 %v1071, %v1077
    %v1100 = vmul.f32 %v1072, %v1077
    %v1101 = vmul.f32 %v1073, %v1077
    %v1102 = vmul.f32 %v1074, %v1077
    %v1103 = vmul.f32 %v1075, %v1077
    %v1130 = vlaneseq
    %v1131 = vshrl.u32 %v1130, 7
    %v1132 = vsub.s32 0, %v1131
    %v1133 = vrot.slane %v1078, %v1132
    %v1134 = vlaneseq
    %v1135 = vshrl.u32 %v1134, 7
    %v1136 = vsub.s32 1, %v1135
    %v1137 = vrot.slane %v1078, %v1136
    %v1138 = vlaneseq
    %v1139 = vshrl.u32 %v1138, 7
    %v1140 = vsub.s32 2, %v1139
    %v1141 = vrot.slane %v1078, %v1140
    %v1142 = vlaneseq
    %v1143 = vshrl.u32 %v1142, 7
    %v1144 = vsub.s32 3, %v1143
    %v1145 = vrot.slane %v1078, %v1144
    %v1146 = vlaneseq
    %v1147 = vshrl.u32 %v1146, 7
    %v1148 = vsub.s32 4, %v1147
    %v1149 = vrot.slane %v1078, %v1148
    %v1150 = vlaneseq
    %v1151 = vshrl.u32 %v1150, 7
    %v1152 = vsub.s32 5, %v1151
    %v1153 = vrot.slane %v1078, %v1152
    %v1154 = vlaneseq
    %v1155 = vshrl.u32 %v1154, 7
    %v1156 = vsub.s32 6, %v1155
    %v1157 = vrot.slane %v1078, %v1156
    %v1158 = vlaneseq
    %v1159 = vshrl.u32 %v1158, 7
    %v1160 = vsub.s32 7, %v1159
    %v1161 = vrot.slane %v1078, %v1160
    %v1162 = vlaneseq
    %v1163 = vshrl.u32 %v1162, 7
    %v1164 = vsub.s32 0, %v1163
    %v1165 = vrot.slane %v1079, %v1164
    %v1166 = vlaneseq
    %v1167 = vshrl.u32 %v1166, 7
    %v1168 = vsub.s32 1, %v1167
    %v1169 = vrot.slane %v1079, %v1168
    %v1170 = vlaneseq
    %v1171 = vshrl.u32 %v1170, 7
    %v1172 = vsub.s32 2, %v1171
    %v1173 = vrot.slane %v1079, %v1172
    %v1174 = vlaneseq
    %v1175 = vshrl.u32 %v1174, 7
    %v1176 = vsub.s32 3, %v1175
    %v1177 = vrot.slane %v1079, %v1176
    %v1178 = vlaneseq
    %v1179 = vshrl.u32 %v1178, 7
    %v1180 = vsub.s32 4, %v1179
    %v1181 = vrot.slane %v1079, %v1180
    %v1182 = vlaneseq
    %v1183 = vshrl.u32 %v1182, 7
    %v1184 = vsub.s32 5, %v1183
    %v1185 = vrot.slane %v1079, %v1184
    %v1186 = vlaneseq
    %v1187 = vshrl.u32 %v1186, 7
    %v1188 = vsub.s32 6, %v1187
    %v1189 = vrot.slane %v1079, %v1188
    %v1190 = vlaneseq
    %v1191 = vshrl.u32 %v1190, 7
    %v1192 = vsub.s32 7, %v1191
    %v1193 = vrot.slane %v1079, %v1192
    %v1194 = vlaneseq
    %v1195 = vshrl.u32 %v1194, 7
    %v1196 = vsub.s32 0, %v1195
    %v1197 = vrot.slane %v1080, %v1196
    %v1198 = vlaneseq
    %v1199 = vshrl.u32 %v1198, 7
    %v1200 = vsub.s32 1, %v1199
    %v1201 = vrot.slane %v1080, %v1200
    %v1202 = vlaneseq
    %v1203 = vshrl.u32 %v1202, 7
    %v1204 = vsub.s32 2, %v1203
    %v1205 = vrot.slane %v1080, %v1204
    %v1206 = vlaneseq
    %v1207 = vshrl.u32 %v1206, 7
    %v1208 = vsub.s32 3, %v1207
    %v1209 = vrot.slane %v1080, %v1208
    %v1210 = vlaneseq
    %v1211 = vshrl.u32 %v1210, 7
    %v1212 = vsub.s32 4, %v1211
    %v1213 = vrot.slane %v1080, %v1212
    %v1214 = vlaneseq
    %v1215 = vshrl.u32 %v1214, 7
    %v1216 = vsub.s32 5, %v1215
    %v1217 = vrot.slane %v1080, %v1216
    %v1218 = vlaneseq
    %v1219 = vshrl.u32 %v1218, 7
    %v1220 = vsub.s32 6, %v1219
    %v1221 = vrot.slane %v1080, %v1220
    %v1222 = vlaneseq
    %v1223 = vshrl.u32 %v1222, 7
    %v1224 = vsub.s32 7, %v1223
    %v1225 = vrot.slane %v1080, %v1224
    %v1226 = vlaneseq
    %v1227 = vshrl.u32 %v1226, 7
    %v1228 = vsub.s32 0, %v1227
    %v1229 = vrot.slane %v1081, %v1228
    %v1230 = vlaneseq
    %v1231 = vshrl.u32 %v1230, 7
    %v1232 = vsub.s32 1, %v1231
    %v1233 = vrot.slane %v1081, %v1232
    %v1234 = vlaneseq
    %v1235 = vshrl.u32 %v1234, 7
    %v1236 = vsub.s32 2, %v1235
    %v1237 = vrot.slane %v1081, %v1236
    %v1238 = vlaneseq
    %v1239 = vshrl.u32 %v1238, 7
    %v1240 = vsub.s32 3, %v1239
    %v1241 = vrot.slane %v1081, %v1240
    %v1242 = vlaneseq
    %v1243 = vshrl.u32 %v1242, 7
    %v1244 = vsub.s32 4, %v1243
    %v1245 = vrot.slane %v1081, %v1244
    %v1246 = vlaneseq
    %v1247 = vshrl.u32 %v1246, 7
    %v1248 = vsub.s32 5, %v1247
    %v1249 = vrot.slane %v1081, %v1248
    %v1250 = vlaneseq
    %v1251 = vshrl.u32 %v1250, 7
    %v1252 = vsub.s32 6, %v1251
    %v1253 = vrot.slane %v1081, %v1252
    %v1254 = vlaneseq
    %v1255 = vshrl.u32 %v1254, 7
    %v1256 = vsub.s32 7, %v1255
    %v1257 = vrot.slane %v1081, %v1256
    %v1258 = vlaneseq
    %v1259 = vshrl.u32 %v1258, 7
    %v1260 = vsub.s32 0, %v1259
    %v1261 = vrot.slane %v1082, %v1260
    %v1262 = vlaneseq
    %v1263 = vshrl.u32 %v1262, 7
    %v1264 = vsub.s32 1, %v1263
    %v1265 = vrot.slane %v1082, %v1264
    %v1266 = vlaneseq
    %v1267 = vshrl.u32 %v1266, 7
    %v1268 = vsub.s32 2, %v1267
    %v1269 = vrot.slane %v1082, %v1268
    %v1270 = vlaneseq
    %v1271 = vshrl.u32 %v1270, 7
    %v1272 = vsub.s32 3, %v1271
    %v1273 = vrot.slane %v1082, %v1272
    %v1274 = vlaneseq
    %v1275 = vshrl.u32 %v1274, 7
    %v1276 = vsub.s32 4, %v1275
    %v1277 = vrot.slane %v1082, %v1276
    %v1278 = vlaneseq
    %v1279 = vshrl.u32 %v1278, 7
    %v1280 = vsub.s32 5, %v1279
    %v1281 = vrot.slane %v1082, %v1280
    %v1282 = vlaneseq
    %v1283 = vshrl.u32 %v1282, 7
    %v1284 = vsub.s32 6, %v1283
    %v1285 = vrot.slane %v1082, %v1284
    %v1286 = vlaneseq
    %v1287 = vshrl.u32 %v1286, 7
    %v1288 = vsub.s32 7, %v1287
    %v1289 = vrot.slane %v1082, %v1288
    %v1290 = vlaneseq
    %v1291 = vshrl.u32 %v1290, 7
    %v1292 = vsub.s32 0, %v1291
    %v1293 = vrot.slane %v1083, %v1292
    %v1294 = vlaneseq
    %v1295 = vshrl.u32 %v1294, 7
    %v1296 = vsub.s32 1, %v1295
    %v1297 = vrot.slane %v1083, %v1296
    %v1298 = vlaneseq
    %v1299 = vshrl.u32 %v1298, 7
    %v1300 = vsub.s32 2, %v1299
    %v1301 = vrot.slane %v1083, %v1300
    %v1302 = vlaneseq
    %v1303 = vshrl.u32 %v1302, 7
    %v1304 = vsub.s32 3, %v1303
    %v1305 = vrot.slane %v1083, %v1304
    %v1306 = vlaneseq
    %v1307 = vshrl.u32 %v1306, 7
    %v1308 = vsub.s32 4, %v1307
    %v1309 = vrot.slane %v1083, %v1308
    %v1310 = vlaneseq
    %v1311 = vshrl.u32 %v1310, 7
    %v1312 = vsub.s32 5, %v1311
    %v1313 = vrot.slane %v1083, %v1312
    %v1314 = vlaneseq
    %v1315 = vshrl.u32 %v1314, 7
    %v1316 = vsub.s32 6, %v1315
    %v1317 = vrot.slane %v1083, %v1316
    %v1318 = vlaneseq
    %v1319 = vshrl.u32 %v1318, 7
    %v1320 = vsub.s32 7, %v1319
    %v1321 = vrot.slane %v1083, %v1320
    %v1322 = vlaneseq
    %v1323 = vshrl.u32 %v1322, 7
    %v1324 = vsub.s32 0, %v1323
    %v1325 = vrot.slane %v1084, %v1324
    %v1326 = vlaneseq
    %v1327 = vshrl.u32 %v1326, 7
    %v1328 = vsub.s32 1, %v1327
    %v1329 = vrot.slane %v1084, %v1328
    %v1330 = vlaneseq
    %v1331 = vshrl.u32 %v1330, 7
    %v1332 = vsub.s32 2, %v1331
    %v1333 = vrot.slane %v1084, %v1332
    %v1334 = vlaneseq
    %v1335 = vshrl.u32 %v1334, 7
    %v1336 = vsub.s32 3, %v1335
    %v1337 = vrot.slane %v1084, %v1336
    %v1338 = vlaneseq
    %v1339 = vshrl.u32 %v1338, 7
    %v1340 = vsub.s32 4, %v1339
    %v1341 = vrot.slane %v1084, %v1340
    %v1342 = vlaneseq
    %v1343 = vshrl.u32 %v1342, 7
    %v1344 = vsub.s32 5, %v1343
    %v1345 = vrot.slane %v1084, %v1344
    %v1346 = vlaneseq
    %v1347 = vshrl.u32 %v1346, 7
    %v1348 = vsub.s32 6, %v1347
    %v1349 = vrot.slane %v1084, %v1348
    %v1350 = vlaneseq
    %v1351 = vshrl.u32 %v1350, 7
    %v1352 = vsub.s32 7, %v1351
    %v1353 = vrot.slane %v1084, %v1352
    %v1354 = vlaneseq
    %v1355 = vshrl.u32 %v1354, 7
    %v1356 = vsub.s32 0, %v1355
    %v1357 = vrot.slane %v1085, %v1356
    %v1358 = vlaneseq
    %v1359 = vshrl.u32 %v1358, 7
    %v1360 = vsub.s32 1, %v1359
    %v1361 = vrot.slane %v1085, %v1360
    %v1362 = vlaneseq
    %v1363 = vshrl.u32 %v1362, 7
    %v1364 = vsub.s32 2, %v1363
    %v1365 = vrot.slane %v1085, %v1364
    %v1366 = vlaneseq
    %v1367 = vshrl.u32 %v1366, 7
    %v1368 = vsub.s32 3, %v1367
    %v1369 = vrot.slane %v1085, %v1368
    %v1370 = vlaneseq
    %v1371 = vshrl.u32 %v1370, 7
    %v1372 = vsub.s32 4, %v1371
    %v1373 = vrot.slane %v1085, %v1372
    %v1374 = vlaneseq
    %v1375 = vshrl.u32 %v1374, 7
    %v1376 = vsub.s32 5, %v1375
    %v1377 = vrot.slane %v1085, %v1376
    %v1378 = vlaneseq
    %v1379 = vshrl.u32 %v1378, 7
    %v1380 = vsub.s32 6, %v1379
    %v1381 = vrot.slane %v1085, %v1380
    %v1382 = vlaneseq
    %v1383 = vshrl.u32 %v1382, 7
    %v1384 = vsub.s32 7, %v1383
    %v1385 = vrot.slane %v1085, %v1384
    %v1386 = vlaneseq
    %v1387 = vshrl.u32 %v1386, 7
    %v1388 = vsub.s32 0, %v1387
    %v1389 = vrot.slane %v1086, %v1388
    %v1390 = vlaneseq
    %v1391 = vshrl.u32 %v1390, 7
    %v1392 = vsub.s32 1, %v1391
    %v1393 = vrot.slane %v1086, %v1392
    %v1394 = vlaneseq
    %v1395 = vshrl.u32 %v1394, 7
    %v1396 = vsub.s32 2, %v1395
    %v1397 = vrot.slane %v1086, %v1396
    %v1398 = vlaneseq
    %v1399 = vshrl.u32 %v1398, 7
    %v1400 = vsub.s32 3, %v1399
    %v1401 = vrot.slane %v1086, %v1400
    %v1402 = vlaneseq
    %v1403 = vshrl.u32 %v1402, 7
    %v1404 = vsub.s32 4, %v1403
    %v1405 = vrot.slane %v1086, %v1404
    %v1406 = vlaneseq
    %v1407 = vshrl.u32 %v1406, 7
    %v1408 = vsub.s32 5, %v1407
    %v1409 = vrot.slane %v1086, %v1408
    %v1410 = vlaneseq
    %v1411 = vshrl.u32 %v1410, 7
    %v1412 = vsub.s32 6, %v1411
    %v1413 = vrot.slane %v1086, %v1412
    %v1414 = vlaneseq
    %v1415 = vshrl.u32 %v1414, 7
    %v1416 = vsub.s32 7, %v1415
    %v1417 = vrot.slane %v1086, %v1416
    %v1418 = vlaneseq
    %v1419 = vshrl.u32 %v1418, 7
    %v1420 = vsub.s32 0, %v1419
    %v1421 = vrot.slane %v1087, %v1420
    %v1422 = vlaneseq
    %v1423 = vshrl.u32 %v1422, 7
    %v1424 = vsub.s32 1, %v1423
    %v1425 = vrot.slane %v1087, %v1424
    %v1426 = vlaneseq
    %v1427 = vshrl.u32 %v1426, 7
    %v1428 = vsub.s32 2, %v1427
    %v1429 = vrot.slane %v1087, %v1428
    %v1430 = vlaneseq
    %v1431 = vshrl.u32 %v1430, 7
    %v1432 = vsub.s32 3, %v1431
    %v1433 = vrot.slane %v1087, %v1432
    %v1434 = vlaneseq
    %v1435 = vshrl.u32 %v1434, 7
    %v1436 = vsub.s32 4, %v1435
    %v1437 = vrot.slane %v1087, %v1436
    %v1438 = vlaneseq
    %v1439 = vshrl.u32 %v1438, 7
    %v1440 = vsub.s32 5, %v1439
    %v1441 = vrot.slane %v1087, %v1440
    %v1442 = vlaneseq
    %v1443 = vshrl.u32 %v1442, 7
    %v1444 = vsub.s32 6, %v1443
    %v1445 = vrot.slane %v1087, %v1444
    %v1446 = vlaneseq
    %v1447 = vshrl.u32 %v1446, 7
    %v1448 = vsub.s32 7, %v1447
    %v1449 = vrot.slane %v1087, %v1448
    %v1450 = vlaneseq
    %v1451 = vshrl.u32 %v1450, 7
    %v1452 = vsub.s32 0, %v1451
    %v1453 = vrot.slane %v1088, %v1452
    %v1454 = vlaneseq
    %v1455 = vshrl.u32 %v1454, 7
    %v1456 = vsub.s32 1, %v1455
    %v1457 = vrot.slane %v1088, %v1456
    %v1458 = vlaneseq
    %v1459 = vshrl.u32 %v1458, 7
    %v1460 = vsub.s32 2, %v1459
    %v1461 = vrot.slane %v1088, %v1460
    %v1462 = vlaneseq
    %v1463 = vshrl.u32 %v1462, 7
    %v1464 = vsub.s32 3, %v1463
    %v1465 = vrot.slane %v1088, %v1464
    %v1466 = vlaneseq
    %v1467 = vshrl.u32 %v1466, 7
    %v1468 = vsub.s32 4, %v1467
    %v1469 = vrot.slane %v1088, %v1468
    %v1470 = vlaneseq
    %v1471 = vshrl.u32 %v1470, 7
    %v1472 = vsub.s32 5, %v1471
    %v1473 = vrot.slane %v1088, %v1472
    %v1474 = vlaneseq
    %v1475 = vshrl.u32 %v1474, 7
    %v1476 = vsub.s32 6, %v1475
    %v1477 = vrot.slane %v1088, %v1476
    %v1478 = vlaneseq
    %v1479 = vshrl.u32 %v1478, 7
    %v1480 = vsub.s32 7, %v1479
    %v1481 = vrot.slane %v1088, %v1480
    %v1482 = vlaneseq
    %v1483 = vshrl.u32 %v1482, 7
    %v1484 = vsub.s32 0, %v1483
    %v1485 = vrot.slane %v1089, %v1484
    %v1486 = vlaneseq
    %v1487 = vshrl.u32 %v1486, 7
    %v1488 = vsub.s32 1, %v1487
    %v1489 = vrot.slane %v1089, %v1488
    %v1490 = vlaneseq
    %v1491 = vshrl.u32 %v1490, 7
    %v1492 = vsub.s32 2, %v1491
    %v1493 = vrot.slane %v1089, %v1492
    %v1494 = vlaneseq
    %v1495 = vshrl.u32 %v1494, 7
    %v1496 = vsub.s32 3, %v1495
    %v1497 = vrot.slane %v1089, %v1496
    %v1498 = vlaneseq
    %v1499 = vshrl.u32 %v1498, 7
    %v1500 = vsub.s32 4, %v1499
    %v1501 = vrot.slane %v1089, %v1500
    %v1502 = vlaneseq
    %v1503 = vshrl.u32 %v1502, 7
    %v1504 = vsub.s32 5, %v1503
    %v1505 = vrot.slane %v1089, %v1504
    %v1506 = vlaneseq
    %v1507 = vshrl.u32 %v1506, 7
    %v1508 = vsub.s32 6, %v1507
    %v1509 = vrot.slane %v1089, %v1508
    %v1510 = vlaneseq
    %v1511 = vshrl.u32 %v1510, 7
    %v1512 = vsub.s32 7, %v1511
    %v1513 = vrot.slane %v1089, %v1512
    %v1514 = vlaneseq
    %v1515 = vshrl.u32 %v1514, 7
    %v1516 = vsub.s32 0, %v1515
    %v1517 = vrot.slane %v1090, %v1516
    %v1518 = vlaneseq
    %v1519 = vshrl.u32 %v1518, 7
    %v1520 = vsub.s32 1, %v1519
    %v1521 = vrot.slane %v1090, %v1520
    %v1522 = vlaneseq
    %v1523 = vshrl.u32 %v1522, 7
    %v1524 = vsub.s32 2, %v1523
    %v1525 = vrot.slane %v1090, %v1524
    %v1526 = vlaneseq
    %v1527 = vshrl.u32 %v1526, 7
    %v1528 = vsub.s32 3, %v1527
    %v1529 = vrot.slane %v1090, %v1528
    %v1530 = vlaneseq
    %v1531 = vshrl.u32 %v1530, 7
    %v1532 = vsub.s32 4, %v1531
    %v1533 = vrot.slane %v1090, %v1532
    %v1534 = vlaneseq
    %v1535 = vshrl.u32 %v1534, 7
    %v1536 = vsub.s32 5, %v1535
    %v1537 = vrot.slane %v1090, %v1536
    %v1538 = vlaneseq
    %v1539 = vshrl.u32 %v1538, 7
    %v1540 = vsub.s32 6, %v1539
    %v1541 = vrot.slane %v1090, %v1540
    %v1542 = vlaneseq
    %v1543 = vshrl.u32 %v1542, 7
    %v1544 = vsub.s32 7, %v1543
    %v1545 = vrot.slane %v1090, %v1544
    %v1546 = vlaneseq
    %v1547 = vshrl.u32 %v1546, 7
    %v1548 = vsub.s32 0, %v1547
    %v1549 = vrot.slane %v1091, %v1548
    %v1550 = vlaneseq
    %v1551 = vshrl.u32 %v1550, 7
    %v1552 = vsub.s32 1, %v1551
    %v1553 = vrot.slane %v1091, %v1552
    %v1554 = vlaneseq
    %v1555 = vshrl.u32 %v1554, 7
    %v1556 = vsub.s32 2, %v1555
    %v1557 = vrot.slane %v1091, %v1556
    %v1558 = vlaneseq
    %v1559 = vshrl.u32 %v1558, 7
    %v1560 = vsub.s32 3, %v1559
    %v1561 = vrot.slane %v1091, %v1560
    %v1562 = vlaneseq
    %v1563 = vshrl.u32 %v1562, 7
    %v1564 = vsub.s32 4, %v1563
    %v1565 = vrot.slane %v1091, %v1564
    %v1566 = vlaneseq
    %v1567 = vshrl.u32 %v1566, 7
    %v1568 = vsub.s32 5, %v1567
    %v1569 = vrot.slane %v1091, %v1568
    %v1570 = vlaneseq
    %v1571 = vshrl.u32 %v1570, 7
    %v1572 = vsub.s32 6, %v1571
    %v1573 = vrot.slane %v1091, %v1572
    %v1574 = vlaneseq
    %v1575 = vshrl.u32 %v1574, 7
    %v1576 = vsub.s32 7, %v1575
    %v1577 = vrot.slane %v1091, %v1576
    %v1578 = vlaneseq
    %v1579 = vshrl.u32 %v1578, 7
    %v1580 = vsub.s32 0, %v1579
    %v1581 = vrot.slane %v1092, %v1580
    %v1582 = vlaneseq
    %v1583 = vshrl.u32 %v1582, 7
    %v1584 = vsub.s32 1, %v1583
    %v1585 = vrot.slane %v1092, %v1584
    %v1586 = vlaneseq
    %v1587 = vshrl.u32 %v1586, 7
    %v1588 = vsub.s32 2, %v1587
    %v1589 = vrot.slane %v1092, %v1588
    %v1590 = vlaneseq
    %v1591 = vshrl.u32 %v1590, 7
    %v1592 = vsub.s32 3, %v1591
    %v1593 = vrot.slane %v1092, %v1592
    %v1594 = vlaneseq
    %v1595 = vshrl.u32 %v1594, 7
    %v1596 = vsub.s32 4, %v1595
    %v1597 = vrot.slane %v1092, %v1596
    %v1598 = vlaneseq
    %v1599 = vshrl.u32 %v1598, 7
    %v1600 = vsub.s32 5, %v1599
    %v1601 = vrot.slane %v1092, %v1600
    %v1602 = vlaneseq
    %v1603 = vshrl.u32 %v1602, 7
    %v1604 = vsub.s32 6, %v1603
    %v1605 = vrot.slane %v1092, %v1604
    %v1606 = vlaneseq
    %v1607 = vshrl.u32 %v1606, 7
    %v1608 = vsub.s32 7, %v1607
    %v1609 = vrot.slane %v1092, %v1608
    %v1610 = vlaneseq
    %v1611 = vshrl.u32 %v1610, 7
    %v1612 = vsub.s32 0, %v1611
    %v1613 = vrot.slane %v1093, %v1612
    %v1614 = vlaneseq
    %v1615 = vshrl.u32 %v1614, 7
    %v1616 = vsub.s32 1, %v1615
    %v1617 = vrot.slane %v1093, %v1616
    %v1618 = vlaneseq
    %v1619 = vshrl.u32 %v1618, 7
    %v1620 = vsub.s32 2, %v1619
    %v1621 = vrot.slane %v1093, %v1620
    %v1622 = vlaneseq
    %v1623 = vshrl.u32 %v1622, 7
    %v1624 = vsub.s32 3, %v1623
    %v1625 = vrot.slane %v1093, %v1624
    %v1626 = vlaneseq
    %v1627 = vshrl.u32 %v1626, 7
    %v1628 = vsub.s32 4, %v1627
    %v1629 = vrot.slane %v1093, %v1628
    %v1630 = vlaneseq
    %v1631 = vshrl.u32 %v1630, 7
    %v1632 = vsub.s32 5, %v1631
    %v1633 = vrot.slane %v1093, %v1632
    %v1634 = vlaneseq
    %v1635 = vshrl.u32 %v1634, 7
    %v1636 = vsub.s32 6, %v1635
    %v1637 = vrot.slane %v1093, %v1636
    %v1638 = vlaneseq
    %v1639 = vshrl.u32 %v1638, 7
    %v1640 = vsub.s32 7, %v1639
    %v1641 = vrot.slane %v1093, %v1640
    %v1642 = vlaneseq
    %v1643 = vshrl.u32 %v1642, 7
    %v1644 = vsub.s32 0, %v1643
    %v1645 = vrot.slane %v1094, %v1644
    %v1646 = vlaneseq
    %v1647 = vshrl.u32 %v1646, 7
    %v1648 = vsub.s32 1, %v1647
    %v1649 = vrot.slane %v1094, %v1648
    %v1650 = vlaneseq
    %v1651 = vshrl.u32 %v1650, 7
    %v1652 = vsub.s32 2, %v1651
    %v1653 = vrot.slane %v1094, %v1652
    %v1654 = vlaneseq
    %v1655 = vshrl.u32 %v1654, 7
    %v1656 = vsub.s32 3, %v1655
    %v1657 = vrot.slane %v1094, %v1656
    %v1658 = vlaneseq
    %v1659 = vshrl.u32 %v1658, 7
    %v1660 = vsub.s32 4, %v1659
    %v1661 = vrot.slane %v1094, %v1660
    %v1662 = vlaneseq
    %v1663 = vshrl.u32 %v1662, 7
    %v1664 = vsub.s32 5, %v1663
    %v1665 = vrot.slane %v1094, %v1664
    %v1666 = vlaneseq
    %v1667 = vshrl.u32 %v1666, 7
    %v1668 = vsub.s32 6, %v1667
    %v1669 = vrot.slane %v1094, %v1668
    %v1670 = vlaneseq
    %v1671 = vshrl.u32 %v1670, 7
    %v1672 = vsub.s32 7, %v1671
    %v1673 = vrot.slane %v1094, %v1672
    %v1674 = vlaneseq
    %v1675 = vshrl.u32 %v1674, 7
    %v1676 = vsub.s32 0, %v1675
    %v1677 = vrot.slane %v1095, %v1676
    %v1678 = vlaneseq
    %v1679 = vshrl.u32 %v1678, 7
    %v1680 = vsub.s32 1, %v1679
    %v1681 = vrot.slane %v1095, %v1680
    %v1682 = vlaneseq
    %v1683 = vshrl.u32 %v1682, 7
    %v1684 = vsub.s32 2, %v1683
    %v1685 = vrot.slane %v1095, %v1684
    %v1686 = vlaneseq
    %v1687 = vshrl.u32 %v1686, 7
    %v1688 = vsub.s32 3, %v1687
    %v1689 = vrot.slane %v1095, %v1688
    %v1690 = vlaneseq
    %v1691 = vshrl.u32 %v1690, 7
    %v1692 = vsub.s32 4, %v1691
    %v1693 = vrot.slane %v1095, %v1692
    %v1694 = vlaneseq
    %v1695 = vshrl.u32 %v1694, 7
    %v1696 = vsub.s32 5, %v1695
    %v1697 = vrot.slane %v1095, %v1696
    %v1698 = vlaneseq
    %v1699 = vshrl.u32 %v1698, 7
    %v1700 = vsub.s32 6, %v1699
    %v1701 = vrot.slane %v1095, %v1700
    %v1702 = vlaneseq
    %v1703 = vshrl.u32 %v1702, 7
    %v1704 = vsub.s32 7, %v1703
    %v1705 = vrot.slane %v1095, %v1704
    %v1706 = vlaneseq
    %v1707 = vshrl.u32 %v1706, 7
    %v1708 = vsub.s32 0, %v1707
    %v1709 = vrot.slane %v1096, %v1708
    %v1710 = vlaneseq
    %v1711 = vshrl.u32 %v1710, 7
    %v1712 = vsub.s32 1, %v1711
    %v1713 = vrot.slane %v1096, %v1712
    %v1714 = vlaneseq
    %v1715 = vshrl.u32 %v1714, 7
    %v1716 = vsub.s32 2, %v1715
    %v1717 = vrot.slane %v1096, %v1716
    %v1718 = vlaneseq
    %v1719 = vshrl.u32 %v1718, 7
    %v1720 = vsub.s32 3, %v1719
    %v1721 = vrot.slane %v1096, %v1720
    %v1722 = vlaneseq
    %v1723 = vshrl.u32 %v1722, 7
    %v1724 = vsub.s32 4, %v1723
    %v1725 = vrot.slane %v1096, %v1724
    %v1726 = vlaneseq
    %v1727 = vshrl.u32 %v1726, 7
    %v1728 = vsub.s32 5, %v1727
    %v1729 = vrot.slane %v1096, %v1728
    %v1730 = vlaneseq
    %v1731 = vshrl.u32 %v1730, 7
    %v1732 = vsub.s32 6, %v1731
    %v1733 = vrot.slane %v1096, %v1732
    %v1734 = vlaneseq
    %v1735 = vshrl.u32 %v1734, 7
    %v1736 = vsub.s32 7, %v1735
    %v1737 = vrot.slane %v1096, %v1736
    %v1738 = vlaneseq
    %v1739 = vshrl.u32 %v1738, 7
    %v1740 = vsub.s32 0, %v1739
    %v1741 = vrot.slane %v1097, %v1740
    %v1742 = vlaneseq
    %v1743 = vshrl.u32 %v1742, 7
    %v1744 = vsub.s32 1, %v1743
    %v1745 = vrot.slane %v1097, %v1744
    %v1746 = vlaneseq
    %v1747 = vshrl.u32 %v1746, 7
    %v1748 = vsub.s32 2, %v1747
    %v1749 = vrot.slane %v1097, %v1748
    %v1750 = vlaneseq
    %v1751 = vshrl.u32 %v1750, 7
    %v1752 = vsub.s32 3, %v1751
    %v1753 = vrot.slane %v1097, %v1752
    %v1754 = vlaneseq
    %v1755 = vshrl.u32 %v1754, 7
    %v1756 = vsub.s32 4, %v1755
    %v1757 = vrot.slane %v1097, %v1756
    %v1758 = vlaneseq
    %v1759 = vshrl.u32 %v1758, 7
    %v1760 = vsub.s32 5, %v1759
    %v1761 = vrot.slane %v1097, %v1760
    %v1762 = vlaneseq
    %v1763 = vshrl.u32 %v1762, 7
    %v1764 = vsub.s32 6, %v1763
    %v1765 = vrot.slane %v1097, %v1764
    %v1766 = vlaneseq
    %v1767 = vshrl.u32 %v1766, 7
    %v1768 = vsub.s32 7, %v1767
    %v1769 = vrot.slane %v1097, %v1768
    %v1770 = vlaneseq
    %v1771 = vshrl.u32 %v1770, 7
    %v1772 = vsub.s32 0, %v1771
    %v1773 = vrot.slane %v1098, %v1772
    %v1774 = vlaneseq
    %v1775 = vshrl.u32 %v1774, 7
    %v1776 = vsub.s32 1, %v1775
    %v1777 = vrot.slane %v1098, %v1776
    %v1778 = vlaneseq
    %v1779 = vshrl.u32 %v1778, 7
    %v1780 = vsub.s32 2, %v1779
    %v1781 = vrot.slane %v1098, %v1780
    %v1782 = vlaneseq
    %v1783 = vshrl.u32 %v1782, 7
    %v1784 = vsub.s32 3, %v1783
    %v1785 = vrot.slane %v1098, %v1784
    %v1786 = vlaneseq
    %v1787 = vshrl.u32 %v1786, 7
    %v1788 = vsub.s32 4, %v1787
    %v1789 = vrot.slane %v1098, %v1788
    %v1790 = vlaneseq
    %v1791 = vshrl.u32 %v1790, 7
    %v1792 = vsub.s32 5, %v1791
    %v1793 = vrot.slane %v1098, %v1792
    %v1794 = vlaneseq
    %v1795 = vshrl.u32 %v1794, 7
    %v1796 = vsub.s32 6, %v1795
    %v1797 = vrot.slane %v1098, %v1796
    %v1798 = vlaneseq
    %v1799 = vshrl.u32 %v1798, 7
    %v1800 = vsub.s32 7, %v1799
    %v1801 = vrot.slane %v1098, %v1800
    %v1802 = vlaneseq
    %v1803 = vshrl.u32 %v1802, 7
    %v1804 = vsub.s32 0, %v1803
    %v1805 = vrot.slane %v1099, %v1804
    %v1806 = vlaneseq
    %v1807 = vshrl.u32 %v1806, 7
    %v1808 = vsub.s32 1, %v1807
    %v1809 = vrot.slane %v1099, %v1808
    %v1810 = vlaneseq
    %v1811 = vshrl.u32 %v1810, 7
    %v1812 = vsub.s32 2, %v1811
    %v1813 = vrot.slane %v1099, %v1812
    %v1814 = vlaneseq
    %v1815 = vshrl.u32 %v1814, 7
    %v1816 = vsub.s32 3, %v1815
    %v1817 = vrot.slane %v1099, %v1816
    %v1818 = vlaneseq
    %v1819 = vshrl.u32 %v1818, 7
    %v1820 = vsub.s32 4, %v1819
    %v1821 = vrot.slane %v1099, %v1820
    %v1822 = vlaneseq
    %v1823 = vshrl.u32 %v1822, 7
    %v1824 = vsub.s32 5, %v1823
    %v1825 = vrot.slane %v1099, %v1824
    %v1826 = vlaneseq
    %v1827 = vshrl.u32 %v1826, 7
    %v1828 = vsub.s32 6, %v1827
    %v1829 = vrot.slane %v1099, %v1828
    %v1830 = vlaneseq
    %v1831 = vshrl.u32 %v1830, 7
    %v1832 = vsub.s32 7, %v1831
    %v1833 = vrot.slane %v1099, %v1832
    %v1834 = vlaneseq
    %v1835 = vshrl.u32 %v1834, 7
    %v1836 = vsub.s32 0, %v1835
    %v1837 = vrot.slane %v1100, %v1836
    %v1838 = vlaneseq
    %v1839 = vshrl.u32 %v1838, 7
    %v1840 = vsub.s32 1, %v1839
    %v1841 = vrot.slane %v1100, %v1840
    %v1842 = vlaneseq
    %v1843 = vshrl.u32 %v1842, 7
    %v1844 = vsub.s32 2, %v1843
    %v1845 = vrot.slane %v1100, %v1844
    %v1846 = vlaneseq
    %v1847 = vshrl.u32 %v1846, 7
    %v1848 = vsub.s32 3, %v1847
    %v1849 = vrot.slane %v1100, %v1848
    %v1850 = vlaneseq
    %v1851 = vshrl.u32 %v1850, 7
    %v1852 = vsub.s32 4, %v1851
    %v1853 = vrot.slane %v1100, %v1852
    %v1854 = vlaneseq
    %v1855 = vshrl.u32 %v1854, 7
    %v1856 = vsub.s32 5, %v1855
    %v1857 = vrot.slane %v1100, %v1856
    %v1858 = vlaneseq
    %v1859 = vshrl.u32 %v1858, 7
    %v1860 = vsub.s32 6, %v1859
    %v1861 = vrot.slane %v1100, %v1860
    %v1862 = vlaneseq
    %v1863 = vshrl.u32 %v1862, 7
    %v1864 = vsub.s32 7, %v1863
    %v1865 = vrot.slane %v1100, %v1864
    %v1866 = vlaneseq
    %v1867 = vshrl.u32 %v1866, 7
    %v1868 = vsub.s32 0, %v1867
    %v1869 = vrot.slane %v1101, %v1868
    %v1870 = vlaneseq
    %v1871 = vshrl.u32 %v1870, 7
    %v1872 = vsub.s32 1, %v1871
    %v1873 = vrot.slane %v1101, %v1872
    %v1874 = vlaneseq
    %v1875 = vshrl.u32 %v1874, 7
    %v1876 = vsub.s32 2, %v1875
    %v1877 = vrot.slane %v1101, %v1876
    %v1878 = vlaneseq
    %v1879 = vshrl.u32 %v1878, 7
    %v1880 = vsub.s32 3, %v1879
    %v1881 = vrot.slane %v1101, %v1880
    %v1882 = vlaneseq
    %v1883 = vshrl.u32 %v1882, 7
    %v1884 = vsub.s32 4, %v1883
    %v1885 = vrot.slane %v1101, %v1884
    %v1886 = vlaneseq
    %v1887 = vshrl.u32 %v1886, 7
    %v1888 = vsub.s32 5, %v1887
    %v1889 = vrot.slane %v1101, %v1888
    %v1890 = vlaneseq
    %v1891 = vshrl.u32 %v1890, 7
    %v1892 = vsub.s32 6, %v1891
    %v1893 = vrot.slane %v1101, %v1892
    %v1894 = vlaneseq
    %v1895 = vshrl.u32 %v1894, 7
    %v1896 = vsub.s32 7, %v1895
    %v1897 = vrot.slane %v1101, %v1896
    %v1898 = vlaneseq
    %v1899 = vshrl.u32 %v1898, 7
    %v1900 = vsub.s32 0, %v1899
    %v1901 = vrot.slane %v1102, %v1900
    %v1902 = vlaneseq
    %v1903 = vshrl.u32 %v1902, 7
    %v1904 = vsub.s32 1, %v1903
    %v1905 = vrot.slane %v1102, %v1904
    %v1906 = vlaneseq
    %v1907 = vshrl.u32 %v1906, 7
    %v1908 = vsub.s32 2, %v1907
    %v1909 = vrot.slane %v1102, %v1908
    %v1910 = vlaneseq
    %v1911 = vshrl.u32 %v1910, 7
    %v1912 = vsub.s32 3, %v1911
    %v1913 = vrot.slane %v1102, %v1912
    %v1914 = vlaneseq
    %v1915 = vshrl.u32 %v1914, 7
    %v1916 = vsub.s32 4, %v1915
    %v1917 = vrot.slane %v1102, %v1916
    %v1918 = vlaneseq
    %v1919 = vshrl.u32 %v1918, 7
    %v1920 = vsub.s32 5, %v1919
    %v1921 = vrot.slane %v1102, %v1920
    %v1922 = vlaneseq
    %v1923 = vshrl.u32 %v1922, 7
    %v1924 = vsub.s32 6, %v1923
    %v1925 = vrot.slane %v1102, %v1924
    %v1926 = vlaneseq
    %v1927 = vshrl.u32 %v1926, 7
    %v1928 = vsub.s32 7, %v1927
    %v1929 = vrot.slane %v1102, %v1928
    %v1930 = vlaneseq
    %v1931 = vshrl.u32 %v1930, 7
    %v1932 = vsub.s32 0, %v1931
    %v1933 = vrot.slane %v1103, %v1932
    %v1934 = vlaneseq
    %v1935 = vshrl.u32 %v1934, 7
    %v1936 = vsub.s32 1, %v1935
    %v1937 = vrot.slane %v1103, %v1936
    %v1938 = vlaneseq
    %v1939 = vshrl.u32 %v1938, 7
    %v1940 = vsub.s32 2, %v1939
    %v1941 = vrot.slane %v1103, %v1940
    %v1942 = vlaneseq
    %v1943 = vshrl.u32 %v1942, 7
    %v1944 = vsub.s32 3, %v1943
    %v1945 = vrot.slane %v1103, %v1944
    %v1946 = vlaneseq
    %v1947 = vshrl.u32 %v1946, 7
    %v1948 = vsub.s32 4, %v1947
    %v1949 = vrot.slane %v1103, %v1948
    %v1950 = vlaneseq
    %v1951 = vshrl.u32 %v1950, 7
    %v1952 = vsub.s32 5, %v1951
    %v1953 = vrot.slane %v1103, %v1952
    %v1954 = vlaneseq
    %v1955 = vshrl.u32 %v1954, 7
    %v1956 = vsub.s32 6, %v1955
    %v1957 = vrot.slane %v1103, %v1956
    %v1958 = vlaneseq
    %v1959 = vshrl.u32 %v1958, 7
    %v1960 = vsub.s32 7, %v1959
    %v1961 = vrot.slane %v1103, %v1960
    %v1962 = vcombine.low %v1133, %v1137
    %v1963 = vcombine.low %v1141, %v1145
    %v1964 = vcombine.low %v1149, %v1153
    %v1965 = vcombine.low %v1157, %v1161
    %v1967 = vunpack.c.l.s4 1966171168
    %v1968 = vunpack.c.0.s8 %v1967
    %v1969 = vlaneseq
    %v1970 = vshrl.u32 %v1969, 7
    %v1971 = vsub.s32 %v1968, %v1970
    %v1972 = vrot.slane %v1962, %v1971
    %v1974 = vunpack.c.l.s4 1966171168
    %v1975 = vunpack.c.0.s8 %v1974
    %v1976 = vlaneseq
    %v1977 = vshrl.u32 %v1976, 7
    %v1978 = vsub.s32 %v1975, %v1977
    %v1979 = vrot.slane %v1963, %v1978
    %v1981 = vunpack.c.l.s4 1966171168
    %v1982 = vunpack.c.0.s8 %v1981
    %v1983 = vlaneseq
    %v1984 = vshrl.u32 %v1983, 7
    %v1985 = vsub.s32 %v1982, %v1984
    %v1986 = vrot.slane %v1964, %v1985
    %v1988 = vunpack.c.l.s4 1966171168
    %v1989 = vunpack.c.0.s8 %v1988
    %v1990 = vlaneseq
    %v1991 = vshrl.u32 %v1990, 7
    %v1992 = vsub.s32 %v1989, %v1991
    %v1993 = vrot.slane %v1965, %v1992
    %v1994 = vcombine.low %v1972, %v1979
    %v1995 = vcombine.low %v1986, %v1993
    %v1997 = vunpack.c.l.s4 1966171168
    %v1998 = vunpack.c.0.s8 %v1997
    %v1999 = vlaneseq
    %v2000 = vshrl.u32 %v1999, 7
    %v2001 = vsub.s32 %v1998, %v2000
    %v2002 = vrot.slane %v1994, %v2001
    %v2004 = vunpack.c.l.s4 1966171168
    %v2005 = vunpack.c.0.s8 %v2004
    %v2006 = vlaneseq
    %v2007 = vshrl.u32 %v2006, 7
    %v2008 = vsub.s32 %v2005, %v2007
    %v2009 = vrot.slane %v1995, %v2008
    %v2010 = vcombine.low %v2002, %v2009
    %v2011 = vcombine.low %v1165, %v1169
    %v2012 = vcombine.low %v1173, %v1177
    %v2013 = vcombine.low %v1181, %v1185
    %v2014 = vcombine.low %v1189, %v1193
    %v2016 = vunpack.c.l.s4 1966171168
    %v2017 = vunpack.c.0.s8 %v2016
    %v2018 = vlaneseq
    %v2019 = vshrl.u32 %v2018, 7
    %v2020 = vsub.s32 %v2017, %v2019
    %v2021 = vrot.slane %v2011, %v2020
    %v2023 = vunpack.c.l.s4 1966171168
    %v2024 = vunpack.c.0.s8 %v2023
    %v2025 = vlaneseq
    %v2026 = vshrl.u32 %v2025, 7
    %v2027 = vsub.s32 %v2024, %v2026
    %v2028 = vrot.slane %v2012, %v2027
    %v2030 = vunpack.c.l.s4 1966171168
    %v2031 = vunpack.c.0.s8 %v2030
    %v2032 = vlaneseq
    %v2033 = vshrl.u32 %v2032, 7
    %v2034 = vsub.s32 %v2031, %v2033
    %v2035 = vrot.slane %v2013, %v2034
    %v2037 = vunpack.c.l.s4 1966171168
    %v2038 = vunpack.c.0.s8 %v2037
    %v2039 = vlaneseq
    %v2040 = vshrl.u32 %v2039, 7
    %v2041 = vsub.s32 %v2038, %v2040
    %v2042 = vrot.slane %v2014, %v2041
    %v2043 = vcombine.low %v2021, %v2028
    %v2044 = vcombine.low %v2035, %v2042
    %v2046 = vunpack.c.l.s4 1966171168
    %v2047 = vunpack.c.0.s8 %v2046
    %v2048 = vlaneseq
    %v2049 = vshrl.u32 %v2048, 7
    %v2050 = vsub.s32 %v2047, %v2049
    %v2051 = vrot.slane %v2043, %v2050
    %v2053 = vunpack.c.l.s4 1966171168
    %v2054 = vunpack.c.0.s8 %v2053
    %v2055 = vlaneseq
    %v2056 = vshrl.u32 %v2055, 7
    %v2057 = vsub.s32 %v2054, %v2056
    %v2058 = vrot.slane %v2044, %v2057
    %v2059 = vcombine.low %v2051, %v2058
    %v2060 = vcombine.low %v1197, %v1201
    %v2061 = vcombine.low %v1205, %v1209
    %v2062 = vcombine.low %v1213, %v1217
    %v2063 = vcombine.low %v1221, %v1225
    %v2065 = vunpack.c.l.s4 1966171168
    %v2066 = vunpack.c.0.s8 %v2065
    %v2067 = vlaneseq
    %v2068 = vshrl.u32 %v2067, 7
    %v2069 = vsub.s32 %v2066, %v2068
    %v2070 = vrot.slane %v2060, %v2069
    %v2072 = vunpack.c.l.s4 1966171168
    %v2073 = vunpack.c.0.s8 %v2072
    %v2074 = vlaneseq
    %v2075 = vshrl.u32 %v2074, 7
    %v2076 = vsub.s32 %v2073, %v2075
    %v2077 = vrot.slane %v2061, %v2076
    %v2079 = vunpack.c.l.s4 1966171168
    %v2080 = vunpack.c.0.s8 %v2079
    %v2081 = vlaneseq
    %v2082 = vshrl.u32 %v2081, 7
    %v2083 = vsub.s32 %v2080, %v2082
    %v2084 = vrot.slane %v2062, %v2083
    %v2086 = vunpack.c.l.s4 1966171168
    %v2087 = vunpack.c.0.s8 %v2086
    %v2088 = vlaneseq
    %v2089 = vshrl.u32 %v2088, 7
    %v2090 = vsub.s32 %v2087, %v2089
    %v2091 = vrot.slane %v2063, %v2090
    %v2092 = vcombine.low %v2070, %v2077
    %v2093 = vcombine.low %v2084, %v2091
    %v2095 = vunpack.c.l.s4 1966171168
    %v2096 = vunpack.c.0.s8 %v2095
    %v2097 = vlaneseq
    %v2098 = vshrl.u32 %v2097, 7
    %v2099 = vsub.s32 %v2096, %v2098
    %v2100 = vrot.slane %v2092, %v2099
    %v2102 = vunpack.c.l.s4 1966171168
    %v2103 = vunpack.c.0.s8 %v2102
    %v2104 = vlaneseq
    %v2105 = vshrl.u32 %v2104, 7
    %v2106 = vsub.s32 %v2103, %v2105
    %v2107 = vrot.slane %v2093, %v2106
    %v2108 = vcombine.low %v2100, %v2107
    %v2109 = vcombine.low %v1229, %v1233
    %v2110 = vcombine.low %v1237, %v1241
    %v2111 = vcombine.low %v1245, %v1249
    %v2112 = vcombine.low %v1253, %v1257
    %v2114 = vunpack.c.l.s4 1966171168
    %v2115 = vunpack.c.0.s8 %v2114
    %v2116 = vlaneseq
    %v2117 = vshrl.u32 %v2116, 7
    %v2118 = vsub.s32 %v2115, %v2117
    %v2119 = vrot.slane %v2109, %v2118
    %v2121 = vunpack.c.l.s4 1966171168
    %v2122 = vunpack.c.0.s8 %v2121
    %v2123 = vlaneseq
    %v2124 = vshrl.u32 %v2123, 7
    %v2125 = vsub.s32 %v2122, %v2124
    %v2126 = vrot.slane %v2110, %v2125
    %v2128 = vunpack.c.l.s4 1966171168
    %v2129 = vunpack.c.0.s8 %v2128
    %v2130 = vlaneseq
    %v2131 = vshrl.u32 %v2130, 7
    %v2132 = vsub.s32 %v2129, %v2131
    %v2133 = vrot.slane %v2111, %v2132
    %v2135 = vunpack.c.l.s4 1966171168
    %v2136 = vunpack.c.0.s8 %v2135
    %v2137 = vlaneseq
    %v2138 = vshrl.u32 %v2137, 7
    %v2139 = vsub.s32 %v2136, %v2138
    %v2140 = vrot.slane %v2112, %v2139
    %v2141 = vcombine.low %v2119, %v2126
    %v2142 = vcombine.low %v2133, %v2140
    %v2144 = vunpack.c.l.s4 1966171168
    %v2145 = vunpack.c.0.s8 %v2144
    %v2146 = vlaneseq
    %v2147 = vshrl.u32 %v2146, 7
    %v2148 = vsub.s32 %v2145, %v2147
    %v2149 = vrot.slane %v2141, %v2148
    %v2151 = vunpack.c.l.s4 1966171168
    %v2152 = vunpack.c.0.s8 %v2151
    %v2153 = vlaneseq
    %v2154 = vshrl.u32 %v2153, 7
    %v2155 = vsub.s32 %v2152, %v2154
    %v2156 = vrot.slane %v2142, %v2155
    %v2157 = vcombine.low %v2149, %v2156
    %v2158 = vcombine.low %v1261, %v1265
    %v2159 = vcombine.low %v1269, %v1273
    %v2160 = vcombine.low %v1277, %v1281
    %v2161 = vcombine.low %v1285, %v1289
    %v2163 = vunpack.c.l.s4 1966171168
    %v2164 = vunpack.c.0.s8 %v2163
    %v2165 = vlaneseq
    %v2166 = vshrl.u32 %v2165, 7
    %v2167 = vsub.s32 %v2164, %v2166
    %v2168 = vrot.slane %v2158, %v2167
    %v2170 = vunpack.c.l.s4 1966171168
    %v2171 = vunpack.c.0.s8 %v2170
    %v2172 = vlaneseq
    %v2173 = vshrl.u32 %v2172, 7
    %v2174 = vsub.s32 %v2171, %v2173
    %v2175 = vrot.slane %v2159, %v2174
    %v2177 = vunpack.c.l.s4 1966171168
    %v2178 = vunpack.c.0.s8 %v2177
    %v2179 = vlaneseq
    %v2180 = vshrl.u32 %v2179, 7
    %v2181 = vsub.s32 %v2178, %v2180
    %v2182 = vrot.slane %v2160, %v2181
    %v2184 = vunpack.c.l.s4 1966171168
    %v2185 = vunpack.c.0.s8 %v2184
    %v2186 = vlaneseq
    %v2187 = vshrl.u32 %v2186, 7
    %v2188 = vsub.s32 %v2185, %v2187
    %v2189 = vrot.slane %v2161, %v2188
    %v2190 = vcombine.low %v2168, %v2175
    %v2191 = vcombine.low %v2182, %v2189
    %v2193 = vunpack.c.l.s4 1966171168
    %v2194 = vunpack.c.0.s8 %v2193
    %v2195 = vlaneseq
    %v2196 = vshrl.u32 %v2195, 7
    %v2197 = vsub.s32 %v2194, %v2196
    %v2198 = vrot.slane %v2190, %v2197
    %v2200 = vunpack.c.l.s4 1966171168
    %v2201 = vunpack.c.0.s8 %v2200
    %v2202 = vlaneseq
    %v2203 = vshrl.u32 %v2202, 7
    %v2204 = vsub.s32 %v2201, %v2203
    %v2205 = vrot.slane %v2191, %v2204
    %v2206 = vcombine.low %v2198, %v2205
    %v2207 = vcombine.low %v1293, %v1297
    %v2208 = vcombine.low %v1301, %v1305
    %v2209 = vcombine.low %v1309, %v1313
    %v2210 = vcombine.low %v1317, %v1321
    %v2212 = vunpack.c.l.s4 1966171168
    %v2213 = vunpack.c.0.s8 %v2212
    %v2214 = vlaneseq
    %v2215 = vshrl.u32 %v2214, 7
    %v2216 = vsub.s32 %v2213, %v2215
    %v2217 = vrot.slane %v2207, %v2216
    %v2219 = vunpack.c.l.s4 1966171168
    %v2220 = vunpack.c.0.s8 %v2219
    %v2221 = vlaneseq
    %v2222 = vshrl.u32 %v2221, 7
    %v2223 = vsub.s32 %v2220, %v2222
    %v2224 = vrot.slane %v2208, %v2223
    %v2226 = vunpack.c.l.s4 1966171168
    %v2227 = vunpack.c.0.s8 %v2226
    %v2228 = vlaneseq
    %v2229 = vshrl.u32 %v2228, 7
    %v2230 = vsub.s32 %v2227, %v2229
    %v2231 = vrot.slane %v2209, %v2230
    %v2233 = vunpack.c.l.s4 1966171168
    %v2234 = vunpack.c.0.s8 %v2233
    %v2235 = vlaneseq
    %v2236 = vshrl.u32 %v2235, 7
    %v2237 = vsub.s32 %v2234, %v2236
    %v2238 = vrot.slane %v2210, %v2237
    %v2239 = vcombine.low %v2217, %v2224
    %v2240 = vcombine.low %v2231, %v2238
    %v2242 = vunpack.c.l.s4 1966171168
    %v2243 = vunpack.c.0.s8 %v2242
    %v2244 = vlaneseq
    %v2245 = vshrl.u32 %v2244, 7
    %v2246 = vsub.s32 %v2243, %v2245
    %v2247 = vrot.slane %v2239, %v2246
    %v2249 = vunpack.c.l.s4 1966171168
    %v2250 = vunpack.c.0.s8 %v2249
    %v2251 = vlaneseq
    %v2252 = vshrl.u32 %v2251, 7
    %v2253 = vsub.s32 %v2250, %v2252
    %v2254 = vrot.slane %v2240, %v2253
    %v2255 = vcombine.low %v2247, %v2254
    %v2256 = vcombine.low %v1325, %v1329
    %v2257 = vcombine.low %v1333, %v1337
    %v2258 = vcombine.low %v1341, %v1345
    %v2259 = vcombine.low %v1349, %v1353
    %v2261 = vunpack.c.l.s4 1966171168
    %v2262 = vunpack.c.0.s8 %v2261
    %v2263 = vlaneseq
    %v2264 = vshrl.u32 %v2263, 7
    %v2265 = vsub.s32 %v2262, %v2264
    %v2266 = vrot.slane %v2256, %v2265
    %v2268 = vunpack.c.l.s4 1966171168
    %v2269 = vunpack.c.0.s8 %v2268
    %v2270 = vlaneseq
    %v2271 = vshrl.u32 %v2270, 7
    %v2272 = vsub.s32 %v2269, %v2271
    %v2273 = vrot.slane %v2257, %v2272
    %v2275 = vunpack.c.l.s4 1966171168
    %v2276 = vunpack.c.0.s8 %v2275
    %v2277 = vlaneseq
    %v2278 = vshrl.u32 %v2277, 7
    %v2279 = vsub.s32 %v2276, %v2278
    %v2280 = vrot.slane %v2258, %v2279
    %v2282 = vunpack.c.l.s4 1966171168
    %v2283 = vunpack.c.0.s8 %v2282
    %v2284 = vlaneseq
    %v2285 = vshrl.u32 %v2284, 7
    %v2286 = vsub.s32 %v2283, %v2285
    %v2287 = vrot.slane %v2259, %v2286
    %v2288 = vcombine.low %v2266, %v2273
    %v2289 = vcombine.low %v2280, %v2287
    %v2291 = vunpack.c.l.s4 1966171168
    %v2292 = vunpack.c.0.s8 %v2291
    %v2293 = vlaneseq
    %v2294 = vshrl.u32 %v2293, 7
    %v2295 = vsub.s32 %v2292, %v2294
    %v2296 = vrot.slane %v2288, %v2295
    %v2298 = vunpack.c.l.s4 1966171168
    %v2299 = vunpack.c.0.s8 %v2298
    %v2300 = vlaneseq
    %v2301 = vshrl.u32 %v2300, 7
    %v2302 = vsub.s32 %v2299, %v2301
    %v2303 = vrot.slane %v2289, %v2302
    %v2304 = vcombine.low %v2296, %v2303
    %v2305 = vcombine.low %v1357, %v1361
    %v2306 = vcombine.low %v1365, %v1369
    %v2307 = vcombine.low %v1373, %v1377
    %v2308 = vcombine.low %v1381, %v1385
    %v2310 = vunpack.c.l.s4 1966171168
    %v2311 = vunpack.c.0.s8 %v2310
    %v2312 = vlaneseq
    %v2313 = vshrl.u32 %v2312, 7
    %v2314 = vsub.s32 %v2311, %v2313
    %v2315 = vrot.slane %v2305, %v2314
    %v2317 = vunpack.c.l.s4 1966171168
    %v2318 = vunpack.c.0.s8 %v2317
    %v2319 = vlaneseq
    %v2320 = vshrl.u32 %v2319, 7
    %v2321 = vsub.s32 %v2318, %v2320
    %v2322 = vrot.slane %v2306, %v2321
    %v2324 = vunpack.c.l.s4 1966171168
    %v2325 = vunpack.c.0.s8 %v2324
    %v2326 = vlaneseq
    %v2327 = vshrl.u32 %v2326, 7
    %v2328 = vsub.s32 %v2325, %v2327
    %v2329 = vrot.slane %v2307, %v2328
    %v2331 = vunpack.c.l.s4 1966171168
    %v2332 = vunpack.c.0.s8 %v2331
    %v2333 = vlaneseq
    %v2334 = vshrl.u32 %v2333, 7
    %v2335 = vsub.s32 %v2332, %v2334
    %v2336 = vrot.slane %v2308, %v2335
    %v2337 = vcombine.low %v2315, %v2322
    %v2338 = vcombine.low %v2329, %v2336
    %v2340 = vunpack.c.l.s4 1966171168
    %v2341 = vunpack.c.0.s8 %v2340
    %v2342 = vlaneseq
    %v2343 = vshrl.u32 %v2342, 7
    %v2344 = vsub.s32 %v2341, %v2343
    %v2345 = vrot.slane %v2337, %v2344
    %v2347 = vunpack.c.l.s4 1966171168
    %v2348 = vunpack.c.0.s8 %v2347
    %v2349 = vlaneseq
    %v2350 = vshrl.u32 %v2349, 7
    %v2351 = vsub.s32 %v2348, %v2350
    %v2352 = vrot.slane %v2338, %v2351
    %v2353 = vcombine.low %v2345, %v2352
    %v2354 = vcombine.low %v1389, %v1393
    %v2355 = vcombine.low %v1397, %v1401
    %v2356 = vcombine.low %v1405, %v1409
    %v2357 = vcombine.low %v1413, %v1417
    %v2359 = vunpack.c.l.s4 1966171168
    %v2360 = vunpack.c.0.s8 %v2359
    %v2361 = vlaneseq
    %v2362 = vshrl.u32 %v2361, 7
    %v2363 = vsub.s32 %v2360, %v2362
    %v2364 = vrot.slane %v2354, %v2363
    %v2366 = vunpack.c.l.s4 1966171168
    %v2367 = vunpack.c.0.s8 %v2366
    %v2368 = vlaneseq
    %v2369 = vshrl.u32 %v2368, 7
    %v2370 = vsub.s32 %v2367, %v2369
    %v2371 = vrot.slane %v2355, %v2370
    %v2373 = vunpack.c.l.s4 1966171168
    %v2374 = vunpack.c.0.s8 %v2373
    %v2375 = vlaneseq
    %v2376 = vshrl.u32 %v2375, 7
    %v2377 = vsub.s32 %v2374, %v2376
    %v2378 = vrot.slane %v2356, %v2377
    %v2380 = vunpack.c.l.s4 1966171168
    %v2381 = vunpack.c.0.s8 %v2380
    %v2382 = vlaneseq
    %v2383 = vshrl.u32 %v2382, 7
    %v2384 = vsub.s32 %v2381, %v2383
    %v2385 = vrot.slane %v2357, %v2384
    %v2386 = vcombine.low %v2364, %v2371
    %v2387 = vcombine.low %v2378, %v2385
    %v2389 = vunpack.c.l.s4 1966171168
    %v2390 = vunpack.c.0.s8 %v2389
    %v2391 = vlaneseq
    %v2392 = vshrl.u32 %v2391, 7
    %v2393 = vsub.s32 %v2390, %v2392
    %v2394 = vrot.slane %v2386, %v2393
    %v2396 = vunpack.c.l.s4 1966171168
    %v2397 = vunpack.c.0.s8 %v2396
    %v2398 = vlaneseq
    %v2399 = vshrl.u32 %v2398, 7
    %v2400 = vsub.s32 %v2397, %v2399
    %v2401 = vrot.slane %v2387, %v2400
    %v2402 = vcombine.low %v2394, %v2401
    %v2403 = vcombine.low %v1421, %v1425
    %v2404 = vcombine.low %v1429, %v1433
    %v2405 = vcombine.low %v1437, %v1441
    %v2406 = vcombine.low %v1445, %v1449
    %v2408 = vunpack.c.l.s4 1966171168
    %v2409 = vunpack.c.0.s8 %v2408
    %v2410 = vlaneseq
    %v2411 = vshrl.u32 %v2410, 7
    %v2412 = vsub.s32 %v2409, %v2411
    %v2413 = vrot.slane %v2403, %v2412
    %v2415 = vunpack.c.l.s4 1966171168
    %v2416 = vunpack.c.0.s8 %v2415
    %v2417 = vlaneseq
    %v2418 = vshrl.u32 %v2417, 7
    %v2419 = vsub.s32 %v2416, %v2418
    %v2420 = vrot.slane %v2404, %v2419
    %v2422 = vunpack.c.l.s4 1966171168
    %v2423 = vunpack.c.0.s8 %v2422
    %v2424 = vlaneseq
    %v2425 = vshrl.u32 %v2424, 7
    %v2426 = vsub.s32 %v2423, %v2425
    %v2427 = vrot.slane %v2405, %v2426
    %v2429 = vunpack.c.l.s4 1966171168
    %v2430 = vunpack.c.0.s8 %v2429
    %v2431 = vlaneseq
    %v2432 = vshrl.u32 %v2431, 7
    %v2433 = vsub.s32 %v2430, %v2432
    %v2434 = vrot.slane %v2406, %v2433
    %v2435 = vcombine.low %v2413, %v2420
    %v2436 = vcombine.low %v2427, %v2434
    %v2438 = vunpack.c.l.s4 1966171168
    %v2439 = vunpack.c.0.s8 %v2438
    %v2440 = vlaneseq
    %v2441 = vshrl.u32 %v2440, 7
    %v2442 = vsub.s32 %v2439, %v2441
    %v2443 = vrot.slane %v2435, %v2442
    %v2445 = vunpack.c.l.s4 1966171168
    %v2446 = vunpack.c.0.s8 %v2445
    %v2447 = vlaneseq
    %v2448 = vshrl.u32 %v2447, 7
    %v2449 = vsub.s32 %v2446, %v2448
    %v2450 = vrot.slane %v2436, %v2449
    %v2451 = vcombine.low %v2443, %v2450
    %v2452 = vcombine.low %v1453, %v1457
    %v2453 = vcombine.low %v1461, %v1465
    %v2454 = vcombine.low %v1469, %v1473
    %v2455 = vcombine.low %v1477, %v1481
    %v2457 = vunpack.c.l.s4 1966171168
    %v2458 = vunpack.c.0.s8 %v2457
    %v2459 = vlaneseq
    %v2460 = vshrl.u32 %v2459, 7
    %v2461 = vsub.s32 %v2458, %v2460
    %v2462 = vrot.slane %v2452, %v2461
    %v2464 = vunpack.c.l.s4 1966171168
    %v2465 = vunpack.c.0.s8 %v2464
    %v2466 = vlaneseq
    %v2467 = vshrl.u32 %v2466, 7
    %v2468 = vsub.s32 %v2465, %v2467
    %v2469 = vrot.slane %v2453, %v2468
    %v2471 = vunpack.c.l.s4 1966171168
    %v2472 = vunpack.c.0.s8 %v2471
    %v2473 = vlaneseq
    %v2474 = vshrl.u32 %v2473, 7
    %v2475 = vsub.s32 %v2472, %v2474
    %v2476 = vrot.slane %v2454, %v2475
    %v2478 = vunpack.c.l.s4 1966171168
    %v2479 = vunpack.c.0.s8 %v2478
    %v2480 = vlaneseq
    %v2481 = vshrl.u32 %v2480, 7
    %v2482 = vsub.s32 %v2479, %v2481
    %v2483 = vrot.slane %v2455, %v2482
    %v2484 = vcombine.low %v2462, %v2469
    %v2485 = vcombine.low %v2476, %v2483
    %v2487 = vunpack.c.l.s4 1966171168
    %v2488 = vunpack.c.0.s8 %v2487
    %v2489 = vlaneseq
    %v2490 = vshrl.u32 %v2489, 7
    %v2491 = vsub.s32 %v2488, %v2490
    %v2492 = vrot.slane %v2484, %v2491
    %v2494 = vunpack.c.l.s4 1966171168
    %v2495 = vunpack.c.0.s8 %v2494
    %v2496 = vlaneseq
    %v2497 = vshrl.u32 %v2496, 7
    %v2498 = vsub.s32 %v2495, %v2497
    %v2499 = vrot.slane %v2485, %v2498
    %v2500 = vcombine.low %v2492, %v2499
    %v2501 = vcombine.low %v1485, %v1489
    %v2502 = vcombine.low %v1493, %v1497
    %v2503 = vcombine.low %v1501, %v1505
    %v2504 = vcombine.low %v1509, %v1513
    %v2506 = vunpack.c.l.s4 1966171168
    %v2507 = vunpack.c.0.s8 %v2506
    %v2508 = vlaneseq
    %v2509 = vshrl.u32 %v2508, 7
    %v2510 = vsub.s32 %v2507, %v2509
    %v2511 = vrot.slane %v2501, %v2510
    %v2513 = vunpack.c.l.s4 1966171168
    %v2514 = vunpack.c.0.s8 %v2513
    %v2515 = vlaneseq
    %v2516 = vshrl.u32 %v2515, 7
    %v2517 = vsub.s32 %v2514, %v2516
    %v2518 = vrot.slane %v2502, %v2517
    %v2520 = vunpack.c.l.s4 1966171168
    %v2521 = vunpack.c.0.s8 %v2520
    %v2522 = vlaneseq
    %v2523 = vshrl.u32 %v2522, 7
    %v2524 = vsub.s32 %v2521, %v2523
    %v2525 = vrot.slane %v2503, %v2524
    %v2527 = vunpack.c.l.s4 1966171168
    %v2528 = vunpack.c.0.s8 %v2527
    %v2529 = vlaneseq
    %v2530 = vshrl.u32 %v2529, 7
    %v2531 = vsub.s32 %v2528, %v2530
    %v2532 = vrot.slane %v2504, %v2531
    %v2533 = vcombine.low %v2511, %v2518
    %v2534 = vcombine.low %v2525, %v2532
    %v2536 = vunpack.c.l.s4 1966171168
    %v2537 = vunpack.c.0.s8 %v2536
    %v2538 = vlaneseq
    %v2539 = vshrl.u32 %v2538, 7
    %v2540 = vsub.s32 %v2537, %v2539
    %v2541 = vrot.slane %v2533, %v2540
    %v2543 = vunpack.c.l.s4 1966171168
    %v2544 = vunpack.c.0.s8 %v2543
    %v2545 = vlaneseq
    %v2546 = vshrl.u32 %v2545, 7
    %v2547 = vsub.s32 %v2544, %v2546
    %v2548 = vrot.slane %v2534, %v2547
    %v2549 = vcombine.low %v2541, %v2548
    %v2550 = vcombine.low %v1517, %v1521
    %v2551 = vcombine.low %v1525, %v1529
    %v2552 = vcombine.low %v1533, %v1537
    %v2553 = vcombine.low %v1541, %v1545
    %v2555 = vunpack.c.l.s4 1966171168
    %v2556 = vunpack.c.0.s8 %v2555
    %v2557 = vlaneseq
    %v2558 = vshrl.u32 %v2557, 7
    %v2559 = vsub.s32 %v2556, %v2558
    %v2560 = vrot.slane %v2550, %v2559
    %v2562 = vunpack.c.l.s4 1966171168
    %v2563 = vunpack.c.0.s8 %v2562
    %v2564 = vlaneseq
    %v2565 = vshrl.u32 %v2564, 7
    %v2566 = vsub.s32 %v2563, %v2565
    %v2567 = vrot.slane %v2551, %v2566
    %v2569 = vunpack.c.l.s4 1966171168
    %v2570 = vunpack.c.0.s8 %v2569
    %v2571 = vlaneseq
    %v2572 = vshrl.u32 %v2571, 7
    %v2573 = vsub.s32 %v2570, %v2572
    %v2574 = vrot.slane %v2552, %v2573
    %v2576 = vunpack.c.l.s4 1966171168
    %v2577 = vunpack.c.0.s8 %v2576
    %v2578 = vlaneseq
    %v2579 = vshrl.u32 %v2578, 7
    %v2580 = vsub.s32 %v2577, %v2579
    %v2581 = vrot.slane %v2553, %v2580
    %v2582 = vcombine.low %v2560, %v2567
    %v2583 = vcombine.low %v2574, %v2581
    %v2585 = vunpack.c.l.s4 1966171168
    %v2586 = vunpack.c.0.s8 %v2585
    %v2587 = vlaneseq
    %v2588 = vshrl.u32 %v2587, 7
    %v2589 = vsub.s32 %v2586, %v2588
    %v2590 = vrot.slane %v2582, %v2589
    %v2592 = vunpack.c.l.s4 1966171168
    %v2593 = vunpack.c.0.s8 %v2592
    %v2594 = vlaneseq
    %v2595 = vshrl.u32 %v2594, 7
    %v2596 = vsub.s32 %v2593, %v2595
    %v2597 = vrot.slane %v2583, %v2596
    %v2598 = vcombine.low %v2590, %v2597
    %v2599 = vcombine.low %v1549, %v1553
    %v2600 = vcombine.low %v1557, %v1561
    %v2601 = vcombine.low %v1565, %v1569
    %v2602 = vcombine.low %v1573, %v1577
    %v2604 = vunpack.c.l.s4 1966171168
    %v2605 = vunpack.c.0.s8 %v2604
    %v2606 = vlaneseq
    %v2607 = vshrl.u32 %v2606, 7
    %v2608 = vsub.s32 %v2605, %v2607
    %v2609 = vrot.slane %v2599, %v2608
    %v2611 = vunpack.c.l.s4 1966171168
    %v2612 = vunpack.c.0.s8 %v2611
    %v2613 = vlaneseq
    %v2614 = vshrl.u32 %v2613, 7
    %v2615 = vsub.s32 %v2612, %v2614
    %v2616 = vrot.slane %v2600, %v2615
    %v2618 = vunpack.c.l.s4 1966171168
    %v2619 = vunpack.c.0.s8 %v2618
    %v2620 = vlaneseq
    %v2621 = vshrl.u32 %v2620, 7
    %v2622 = vsub.s32 %v2619, %v2621
    %v2623 = vrot.slane %v2601, %v2622
    %v2625 = vunpack.c.l.s4 1966171168
    %v2626 = vunpack.c.0.s8 %v2625
    %v2627 = vlaneseq
    %v2628 = vshrl.u32 %v2627, 7
    %v2629 = vsub.s32 %v2626, %v2628
    %v2630 = vrot.slane %v2602, %v2629
    %v2631 = vcombine.low %v2609, %v2616
    %v2632 = vcombine.low %v2623, %v2630
    %v2634 = vunpack.c.l.s4 1966171168
    %v2635 = vunpack.c.0.s8 %v2634
    %v2636 = vlaneseq
    %v2637 = vshrl.u32 %v2636, 7
    %v2638 = vsub.s32 %v2635, %v2637
    %v2639 = vrot.slane %v2631, %v2638
    %v2641 = vunpack.c.l.s4 1966171168
    %v2642 = vunpack.c.0.s8 %v2641
    %v2643 = vlaneseq
    %v2644 = vshrl.u32 %v2643, 7
    %v2645 = vsub.s32 %v2642, %v2644
    %v2646 = vrot.slane %v2632, %v2645
    %v2647 = vcombine.low %v2639, %v2646
    %v2648 = vcombine.low %v1581, %v1585
    %v2649 = vcombine.low %v1589, %v1593
    %v2650 = vcombine.low %v1597, %v1601
    %v2651 = vcombine.low %v1605, %v1609
    %v2653 = vunpack.c.l.s4 1966171168
    %v2654 = vunpack.c.0.s8 %v2653
    %v2655 = vlaneseq
    %v2656 = vshrl.u32 %v2655, 7
    %v2657 = vsub.s32 %v2654, %v2656
    %v2658 = vrot.slane %v2648, %v2657
    %v2660 = vunpack.c.l.s4 1966171168
    %v2661 = vunpack.c.0.s8 %v2660
    %v2662 = vlaneseq
    %v2663 = vshrl.u32 %v2662, 7
    %v2664 = vsub.s32 %v2661, %v2663
    %v2665 = vrot.slane %v2649, %v2664
    %v2667 = vunpack.c.l.s4 1966171168
    %v2668 = vunpack.c.0.s8 %v2667
    %v2669 = vlaneseq
    %v2670 = vshrl.u32 %v2669, 7
    %v2671 = vsub.s32 %v2668, %v2670
    %v2672 = vrot.slane %v2650, %v2671
    %v2674 = vunpack.c.l.s4 1966171168
    %v2675 = vunpack.c.0.s8 %v2674
    %v2676 = vlaneseq
    %v2677 = vshrl.u32 %v2676, 7
    %v2678 = vsub.s32 %v2675, %v2677
    %v2679 = vrot.slane %v2651, %v2678
    %v2680 = vcombine.low %v2658, %v2665
    %v2681 = vcombine.low %v2672, %v2679
    %v2683 = vunpack.c.l.s4 1966171168
    %v2684 = vunpack.c.0.s8 %v2683
    %v2685 = vlaneseq
    %v2686 = vshrl.u32 %v2685, 7
    %v2687 = vsub.s32 %v2684, %v2686
    %v2688 = vrot.slane %v2680, %v2687
    %v2690 = vunpack.c.l.s4 1966171168
    %v2691 = vunpack.c.0.s8 %v2690
    %v2692 = vlaneseq
    %v2693 = vshrl.u32 %v2692, 7
    %v2694 = vsub.s32 %v2691, %v2693
    %v2695 = vrot.slane %v2681, %v2694
    %v2696 = vcombine.low %v2688, %v2695
    %v2697 = vcombine.low %v1613, %v1617
    %v2698 = vcombine.low %v1621, %v1625
    %v2699 = vcombine.low %v1629, %v1633
    %v2700 = vcombine.low %v1637, %v1641
    %v2702 = vunpack.c.l.s4 1966171168
    %v2703 = vunpack.c.0.s8 %v2702
    %v2704 = vlaneseq
    %v2705 = vshrl.u32 %v2704, 7
    %v2706 = vsub.s32 %v2703, %v2705
    %v2707 = vrot.slane %v2697, %v2706
    %v2709 = vunpack.c.l.s4 1966171168
    %v2710 = vunpack.c.0.s8 %v2709
    %v2711 = vlaneseq
    %v2712 = vshrl.u32 %v2711, 7
    %v2713 = vsub.s32 %v2710, %v2712
    %v2714 = vrot.slane %v2698, %v2713
    %v2716 = vunpack.c.l.s4 1966171168
    %v2717 = vunpack.c.0.s8 %v2716
    %v2718 = vlaneseq
    %v2719 = vshrl.u32 %v2718, 7
    %v2720 = vsub.s32 %v2717, %v2719
    %v2721 = vrot.slane %v2699, %v2720
    %v2723 = vunpack.c.l.s4 1966171168
    %v2724 = vunpack.c.0.s8 %v2723
    %v2725 = vlaneseq
    %v2726 = vshrl.u32 %v2725, 7
    %v2727 = vsub.s32 %v2724, %v2726
    %v2728 = vrot.slane %v2700, %v2727
    %v2729 = vcombine.low %v2707, %v2714
    %v2730 = vcombine.low %v2721, %v2728
    %v2732 = vunpack.c.l.s4 1966171168
    %v2733 = vunpack.c.0.s8 %v2732
    %v2734 = vlaneseq
    %v2735 = vshrl.u32 %v2734, 7
    %v2736 = vsub.s32 %v2733, %v2735
    %v2737 = vrot.slane %v2729, %v2736
    %v2739 = vunpack.c.l.s4 1966171168
    %v2740 = vunpack.c.0.s8 %v2739
    %v2741 = vlaneseq
    %v2742 = vshrl.u32 %v2741, 7
    %v2743 = vsub.s32 %v2740, %v2742
    %v2744 = vrot.slane %v2730, %v2743
    %v2745 = vcombine.low %v2737, %v2744
    %v2746 = vcombine.low %v1645, %v1649
    %v2747 = vcombine.low %v1653, %v1657
    %v2748 = vcombine.low %v1661, %v1665
    %v2749 = vcombine.low %v1669, %v1673
    %v2751 = vunpack.c.l.s4 1966171168
    %v2752 = vunpack.c.0.s8 %v2751
    %v2753 = vlaneseq
    %v2754 = vshrl.u32 %v2753, 7
    %v2755 = vsub.s32 %v2752, %v2754
    %v2756 = vrot.slane %v2746, %v2755
    %v2758 = vunpack.c.l.s4 1966171168
    %v2759 = vunpack.c.0.s8 %v2758
    %v2760 = vlaneseq
    %v2761 = vshrl.u32 %v2760, 7
    %v2762 = vsub.s32 %v2759, %v2761
    %v2763 = vrot.slane %v2747, %v2762
    %v2765 = vunpack.c.l.s4 1966171168
    %v2766 = vunpack.c.0.s8 %v2765
    %v2767 = vlaneseq
    %v2768 = vshrl.u32 %v2767, 7
    %v2769 = vsub.s32 %v2766, %v2768
    %v2770 = vrot.slane %v2748, %v2769
    %v2772 = vunpack.c.l.s4 1966171168
    %v2773 = vunpack.c.0.s8 %v2772
    %v2774 = vlaneseq
    %v2775 = vshrl.u32 %v2774, 7
    %v2776 = vsub.s32 %v2773, %v2775
    %v2777 = vrot.slane %v2749, %v2776
    %v2778 = vcombine.low %v2756, %v2763
    %v2779 = vcombine.low %v2770, %v2777
    %v2781 = vunpack.c.l.s4 1966171168
    %v2782 = vunpack.c.0.s8 %v2781
    %v2783 = vlaneseq
    %v2784 = vshrl.u32 %v2783, 7
    %v2785 = vsub.s32 %v2782, %v2784
    %v2786 = vrot.slane %v2778, %v2785
    %v2788 = vunpack.c.l.s4 1966171168
    %v2789 = vunpack.c.0.s8 %v2788
    %v2790 = vlaneseq
    %v2791 = vshrl.u32 %v2790, 7
    %v2792 = vsub.s32 %v2789, %v2791
    %v2793 = vrot.slane %v2779, %v2792
    %v2794 = vcombine.low %v2786, %v2793
    %v2795 = vcombine.low %v1677, %v1681
    %v2796 = vcombine.low %v1685, %v1689
    %v2797 = vcombine.low %v1693, %v1697
    %v2798 = vcombine.low %v1701, %v1705
    %v2800 = vunpack.c.l.s4 1966171168
    %v2801 = vunpack.c.0.s8 %v2800
    %v2802 = vlaneseq
    %v2803 = vshrl.u32 %v2802, 7
    %v2804 = vsub.s32 %v2801, %v2803
    %v2805 = vrot.slane %v2795, %v2804
    %v2807 = vunpack.c.l.s4 1966171168
    %v2808 = vunpack.c.0.s8 %v2807
    %v2809 = vlaneseq
    %v2810 = vshrl.u32 %v2809, 7
    %v2811 = vsub.s32 %v2808, %v2810
    %v2812 = vrot.slane %v2796, %v2811
    %v2814 = vunpack.c.l.s4 1966171168
    %v2815 = vunpack.c.0.s8 %v2814
    %v2816 = vlaneseq
    %v2817 = vshrl.u32 %v2816, 7
    %v2818 = vsub.s32 %v2815, %v2817
    %v2819 = vrot.slane %v2797, %v2818
    %v2821 = vunpack.c.l.s4 1966171168
    %v2822 = vunpack.c.0.s8 %v2821
    %v2823 = vlaneseq
    %v2824 = vshrl.u32 %v2823, 7
    %v2825 = vsub.s32 %v2822, %v2824
    %v2826 = vrot.slane %v2798, %v2825
    %v2827 = vcombine.low %v2805, %v2812
    %v2828 = vcombine.low %v2819, %v2826
    %v2830 = vunpack.c.l.s4 1966171168
    %v2831 = vunpack.c.0.s8 %v2830
    %v2832 = vlaneseq
    %v2833 = vshrl.u32 %v2832, 7
    %v2834 = vsub.s32 %v2831, %v2833
    %v2835 = vrot.slane %v2827, %v2834
    %v2837 = vunpack.c.l.s4 1966171168
    %v2838 = vunpack.c.0.s8 %v2837
    %v2839 = vlaneseq
    %v2840 = vshrl.u32 %v2839, 7
    %v2841 = vsub.s32 %v2838, %v2840
    %v2842 = vrot.slane %v2828, %v2841
    %v2843 = vcombine.low %v2835, %v2842
    %v2844 = vcombine.low %v1709, %v1713
    %v2845 = vcombine.low %v1717, %v1721
    %v2846 = vcombine.low %v1725, %v1729
    %v2847 = vcombine.low %v1733, %v1737
    %v2849 = vunpack.c.l.s4 1966171168
    %v2850 = vunpack.c.0.s8 %v2849
    %v2851 = vlaneseq
    %v2852 = vshrl.u32 %v2851, 7
    %v2853 = vsub.s32 %v2850, %v2852
    %v2854 = vrot.slane %v2844, %v2853
    %v2856 = vunpack.c.l.s4 1966171168
    %v2857 = vunpack.c.0.s8 %v2856
    %v2858 = vlaneseq
    %v2859 = vshrl.u32 %v2858, 7
    %v2860 = vsub.s32 %v2857, %v2859
    %v2861 = vrot.slane %v2845, %v2860
    %v2863 = vunpack.c.l.s4 1966171168
    %v2864 = vunpack.c.0.s8 %v2863
    %v2865 = vlaneseq
    %v2866 = vshrl.u32 %v2865, 7
    %v2867 = vsub.s32 %v2864, %v2866
    %v2868 = vrot.slane %v2846, %v2867
    %v2870 = vunpack.c.l.s4 1966171168
    %v2871 = vunpack.c.0.s8 %v2870
    %v2872 = vlaneseq
    %v2873 = vshrl.u32 %v2872, 7
    %v2874 = vsub.s32 %v2871, %v2873
    %v2875 = vrot.slane %v2847, %v2874
    %v2876 = vcombine.low %v2854, %v2861
    %v2877 = vcombine.low %v2868, %v2875
    %v2879 = vunpack.c.l.s4 1966171168
    %v2880 = vunpack.c.0.s8 %v2879
    %v2881 = vlaneseq
    %v2882 = vshrl.u32 %v2881, 7
    %v2883 = vsub.s32 %v2880, %v2882
    %v2884 = vrot.slane %v2876, %v2883
    %v2886 = vunpack.c.l.s4 1966171168
    %v2887 = vunpack.c.0.s8 %v2886
    %v2888 = vlaneseq
    %v2889 = vshrl.u32 %v2888, 7
    %v2890 = vsub.s32 %v2887, %v2889
    %v2891 = vrot.slane %v2877, %v2890
    %v2892 = vcombine.low %v2884, %v2891
    %v2893 = vcombine.low %v1741, %v1745
    %v2894 = vcombine.low %v1749, %v1753
    %v2895 = vcombine.low %v1757, %v1761
    %v2896 = vcombine.low %v1765, %v1769
    %v2898 = vunpack.c.l.s4 1966171168
    %v2899 = vunpack.c.0.s8 %v2898
    %v2900 = vlaneseq
    %v2901 = vshrl.u32 %v2900, 7
    %v2902 = vsub.s32 %v2899, %v2901
    %v2903 = vrot.slane %v2893, %v2902
    %v2905 = vunpack.c.l.s4 1966171168
    %v2906 = vunpack.c.0.s8 %v2905
    %v2907 = vlaneseq
    %v2908 = vshrl.u32 %v2907, 7
    %v2909 = vsub.s32 %v2906, %v2908
    %v2910 = vrot.slane %v2894, %v2909
    %v2912 = vunpack.c.l.s4 1966171168
    %v2913 = vunpack.c.0.s8 %v2912
    %v2914 = vlaneseq
    %v2915 = vshrl.u32 %v2914, 7
    %v2916 = vsub.s32 %v2913, %v2915
    %v2917 = vrot.slane %v2895, %v2916
    %v2919 = vunpack.c.l.s4 1966171168
    %v2920 = vunpack.c.0.s8 %v2919
    %v2921 = vlaneseq
    %v2922 = vshrl.u32 %v2921, 7
    %v2923 = vsub.s32 %v2920, %v2922
    %v2924 = vrot.slane %v2896, %v2923
    %v2925 = vcombine.low %v2903, %v2910
    %v2926 = vcombine.low %v2917, %v2924
    %v2928 = vunpack.c.l.s4 1966171168
    %v2929 = vunpack.c.0.s8 %v2928
    %v2930 = vlaneseq
    %v2931 = vshrl.u32 %v2930, 7
    %v2932 = vsub.s32 %v2929, %v2931
    %v2933 = vrot.slane %v2925, %v2932
    %v2935 = vunpack.c.l.s4 1966171168
    %v2936 = vunpack.c.0.s8 %v2935
    %v2937 = vlaneseq
    %v2938 = vshrl.u32 %v2937, 7
    %v2939 = vsub.s32 %v2936, %v2938
    %v2940 = vrot.slane %v2926, %v2939
    %v2941 = vcombine.low %v2933, %v2940
    %v2942 = vcombine.low %v1773, %v1777
    %v2943 = vcombine.low %v1781, %v1785
    %v2944 = vcombine.low %v1789, %v1793
    %v2945 = vcombine.low %v1797, %v1801
    %v2947 = vunpack.c.l.s4 1966171168
    %v2948 = vunpack.c.0.s8 %v2947
    %v2949 = vlaneseq
    %v2950 = vshrl.u32 %v2949, 7
    %v2951 = vsub.s32 %v2948, %v2950
    %v2952 = vrot.slane %v2942, %v2951
    %v2954 = vunpack.c.l.s4 1966171168
    %v2955 = vunpack.c.0.s8 %v2954
    %v2956 = vlaneseq
    %v2957 = vshrl.u32 %v2956, 7
    %v2958 = vsub.s32 %v2955, %v2957
    %v2959 = vrot.slane %v2943, %v2958
    %v2961 = vunpack.c.l.s4 1966171168
    %v2962 = vunpack.c.0.s8 %v2961
    %v2963 = vlaneseq
    %v2964 = vshrl.u32 %v2963, 7
    %v2965 = vsub.s32 %v2962, %v2964
    %v2966 = vrot.slane %v2944, %v2965
    %v2968 = vunpack.c.l.s4 1966171168
    %v2969 = vunpack.c.0.s8 %v2968
    %v2970 = vlaneseq
    %v2971 = vshrl.u32 %v2970, 7
    %v2972 = vsub.s32 %v2969, %v2971
    %v2973 = vrot.slane %v2945, %v2972
    %v2974 = vcombine.low %v2952, %v2959
    %v2975 = vcombine.low %v2966, %v2973
    %v2977 = vunpack.c.l.s4 1966171168
    %v2978 = vunpack.c.0.s8 %v2977
    %v2979 = vlaneseq
    %v2980 = vshrl.u32 %v2979, 7
    %v2981 = vsub.s32 %v2978, %v2980
    %v2982 = vrot.slane %v2974, %v2981
    %v2984 = vunpack.c.l.s4 1966171168
    %v2985 = vunpack.c.0.s8 %v2984
    %v2986 = vlaneseq
    %v2987 = vshrl.u32 %v2986, 7
    %v2988 = vsub.s32 %v2985, %v2987
    %v2989 = vrot.slane %v2975, %v2988
    %v2990 = vcombine.low %v2982, %v2989
    %v2991 = vcombine.low %v1805, %v1809
    %v2992 = vcombine.low %v1813, %v1817
    %v2993 = vcombine.low %v1821, %v1825
    %v2994 = vcombine.low %v1829, %v1833
    %v2996 = vunpack.c.l.s4 1966171168
    %v2997 = vunpack.c.0.s8 %v2996
    %v2998 = vlaneseq
    %v2999 = vshrl.u32 %v2998, 7
    %v3000 = vsub.s32 %v2997, %v2999
    %v3001 = vrot.slane %v2991, %v3000
    %v3003 = vunpack.c.l.s4 1966171168
    %v3004 = vunpack.c.0.s8 %v3003
    %v3005 = vlaneseq
    %v3006 = vshrl.u32 %v3005, 7
    %v3007 = vsub.s32 %v3004, %v3006
    %v3008 = vrot.slane %v2992, %v3007
    %v3010 = vunpack.c.l.s4 1966171168
    %v3011 = vunpack.c.0.s8 %v3010
    %v3012 = vlaneseq
    %v3013 = vshrl.u32 %v3012, 7
    %v3014 = vsub.s32 %v3011, %v3013
    %v3015 = vrot.slane %v2993, %v3014
    %v3017 = vunpack.c.l.s4 1966171168
    %v3018 = vunpack.c.0.s8 %v3017
    %v3019 = vlaneseq
    %v3020 = vshrl.u32 %v3019, 7
    %v3021 = vsub.s32 %v3018, %v3020
    %v3022 = vrot.slane %v2994, %v3021
    %v3023 = vcombine.low %v3001, %v3008
    %v3024 = vcombine.low %v3015, %v3022
    %v3026 = vunpack.c.l.s4 1966171168
    %v3027 = vunpack.c.0.s8 %v3026
    %v3028 = vlaneseq
    %v3029 = vshrl.u32 %v3028, 7
    %v3030 = vsub.s32 %v3027, %v3029
    %v3031 = vrot.slane %v3023, %v3030
    %v3033 = vunpack.c.l.s4 1966171168
    %v3034 = vunpack.c.0.s8 %v3033
    %v3035 = vlaneseq
    %v3036 = vshrl.u32 %v3035, 7
    %v3037 = vsub.s32 %v3034, %v3036
    %v3038 = vrot.slane %v3024, %v3037
    %v3039 = vcombine.low %v3031, %v3038
    %v3040 = vcombine.low %v1837, %v1841
    %v3041 = vcombine.low %v1845, %v1849
    %v3042 = vcombine.low %v1853, %v1857
    %v3043 = vcombine.low %v1861, %v1865
    %v3045 = vunpack.c.l.s4 1966171168
    %v3046 = vunpack.c.0.s8 %v3045
    %v3047 = vlaneseq
    %v3048 = vshrl.u32 %v3047, 7
    %v3049 = vsub.s32 %v3046, %v3048
    %v3050 = vrot.slane %v3040, %v3049
    %v3052 = vunpack.c.l.s4 1966171168
    %v3053 = vunpack.c.0.s8 %v3052
    %v3054 = vlaneseq
    %v3055 = vshrl.u32 %v3054, 7
    %v3056 = vsub.s32 %v3053, %v3055
    %v3057 = vrot.slane %v3041, %v3056
    %v3059 = vunpack.c.l.s4 1966171168
    %v3060 = vunpack.c.0.s8 %v3059
    %v3061 = vlaneseq
    %v3062 = vshrl.u32 %v3061, 7
    %v3063 = vsub.s32 %v3060, %v3062
    %v3064 = vrot.slane %v3042, %v3063
    %v3066 = vunpack.c.l.s4 1966171168
    %v3067 = vunpack.c.0.s8 %v3066
    %v3068 = vlaneseq
    %v3069 = vshrl.u32 %v3068, 7
    %v3070 = vsub.s32 %v3067, %v3069
    %v3071 = vrot.slane %v3043, %v3070
    %v3072 = vcombine.low %v3050, %v3057
    %v3073 = vcombine.low %v3064, %v3071
    %v3075 = vunpack.c.l.s4 1966171168
    %v3076 = vunpack.c.0.s8 %v3075
    %v3077 = vlaneseq
    %v3078 = vshrl.u32 %v3077, 7
    %v3079 = vsub.s32 %v3076, %v3078
    %v3080 = vrot.slane %v3072, %v3079
    %v3082 = vunpack.c.l.s4 1966171168
    %v3083 = vunpack.c.0.s8 %v3082
    %v3084 = vlaneseq
    %v3085 = vshrl.u32 %v3084, 7
    %v3086 = vsub.s32 %v3083, %v3085
    %v3087 = vrot.slane %v3073, %v3086
    %v3088 = vcombine.low %v3080, %v3087
    %v3089 = vcombine.low %v1869, %v1873
    %v3090 = vcombine.low %v1877, %v1881
    %v3091 = vcombine.low %v1885, %v1889
    %v3092 = vcombine.low %v1893, %v1897
    %v3094 = vunpack.c.l.s4 1966171168
    %v3095 = vunpack.c.0.s8 %v3094
    %v3096 = vlaneseq
    %v3097 = vshrl.u32 %v3096, 7
    %v3098 = vsub.s32 %v3095, %v3097
    %v3099 = vrot.slane %v3089, %v3098
    %v3101 = vunpack.c.l.s4 1966171168
    %v3102 = vunpack.c.0.s8 %v3101
    %v3103 = vlaneseq
    %v3104 = vshrl.u32 %v3103, 7
    %v3105 = vsub.s32 %v3102, %v3104
    %v3106 = vrot.slane %v3090, %v3105
    %v3108 = vunpack.c.l.s4 1966171168
    %v3109 = vunpack.c.0.s8 %v3108
    %v3110 = vlaneseq
    %v3111 = vshrl.u32 %v3110, 7
    %v3112 = vsub.s32 %v3109, %v3111
    %v3113 = vrot.slane %v3091, %v3112
    %v3115 = vunpack.c.l.s4 1966171168
    %v3116 = vunpack.c.0.s8 %v3115
    %v3117 = vlaneseq
    %v3118 = vshrl.u32 %v3117, 7
    %v3119 = vsub.s32 %v3116, %v3118
    %v3120 = vrot.slane %v3092, %v3119
    %v3121 = vcombine.low %v3099, %v3106
    %v3122 = vcombine.low %v3113, %v3120
    %v3124 = vunpack.c.l.s4 1966171168
    %v3125 = vunpack.c.0.s8 %v3124
    %v3126 = vlaneseq
    %v3127 = vshrl.u32 %v3126, 7
    %v3128 = vsub.s32 %v3125, %v3127
    %v3129 = vrot.slane %v3121, %v3128
    %v3131 = vunpack.c.l.s4 1966171168
    %v3132 = vunpack.c.0.s8 %v3131
    %v3133 = vlaneseq
    %v3134 = vshrl.u32 %v3133, 7
    %v3135 = vsub.s32 %v3132, %v3134
    %v3136 = vrot.slane %v3122, %v3135
    %v3137 = vcombine.low %v3129, %v3136
    %v3138 = vcombine.low %v1901, %v1905
    %v3139 = vcombine.low %v1909, %v1913
    %v3140 = vcombine.low %v1917, %v1921
    %v3141 = vcombine.low %v1925, %v1929
    %v3143 = vunpack.c.l.s4 1966171168
    %v3144 = vunpack.c.0.s8 %v3143
    %v3145 = vlaneseq
    %v3146 = vshrl.u32 %v3145, 7
    %v3147 = vsub.s32 %v3144, %v3146
    %v3148 = vrot.slane %v3138, %v3147
    %v3150 = vunpack.c.l.s4 1966171168
    %v3151 = vunpack.c.0.s8 %v3150
    %v3152 = vlaneseq
    %v3153 = vshrl.u32 %v3152, 7
    %v3154 = vsub.s32 %v3151, %v3153
    %v3155 = vrot.slane %v3139, %v3154
    %v3157 = vunpack.c.l.s4 1966171168
    %v3158 = vunpack.c.0.s8 %v3157
    %v3159 = vlaneseq
    %v3160 = vshrl.u32 %v3159, 7
    %v3161 = vsub.s32 %v3158, %v3160
    %v3162 = vrot.slane %v3140, %v3161
    %v3164 = vunpack.c.l.s4 1966171168
    %v3165 = vunpack.c.0.s8 %v3164
    %v3166 = vlaneseq
    %v3167 = vshrl.u32 %v3166, 7
    %v3168 = vsub.s32 %v3165, %v3167
    %v3169 = vrot.slane %v3141, %v3168
    %v3170 = vcombine.low %v3148, %v3155
    %v3171 = vcombine.low %v3162, %v3169
    %v3173 = vunpack.c.l.s4 1966171168
    %v3174 = vunpack.c.0.s8 %v3173
    %v3175 = vlaneseq
    %v3176 = vshrl.u32 %v3175, 7
    %v3177 = vsub.s32 %v3174, %v3176
    %v3178 = vrot.slane %v3170, %v3177
    %v3180 = vunpack.c.l.s4 1966171168
    %v3181 = vunpack.c.0.s8 %v3180
    %v3182 = vlaneseq
    %v3183 = vshrl.u32 %v3182, 7
    %v3184 = vsub.s32 %v3181, %v3183
    %v3185 = vrot.slane %v3171, %v3184
    %v3186 = vcombine.low %v3178, %v3185
    %v3187 = vcombine.low %v1933, %v1937
    %v3188 = vcombine.low %v1941, %v1945
    %v3189 = vcombine.low %v1949, %v1953
    %v3190 = vcombine.low %v1957, %v1961
    %v3192 = vunpack.c.l.s4 1966171168
    %v3193 = vunpack.c.0.s8 %v3192
    %v3194 = vlaneseq
    %v3195 = vshrl.u32 %v3194, 7
    %v3196 = vsub.s32 %v3193, %v3195
    %v3197 = vrot.slane %v3187, %v3196
    %v3199 = vunpack.c.l.s4 1966171168
    %v3200 = vunpack.c.0.s8 %v3199
    %v3201 = vlaneseq
    %v3202 = vshrl.u32 %v3201, 7
    %v3203 = vsub.s32 %v3200, %v3202
    %v3204 = vrot.slane %v3188, %v3203
    %v3206 = vunpack.c.l.s4 1966171168
    %v3207 = vunpack.c.0.s8 %v3206
    %v3208 = vlaneseq
    %v3209 = vshrl.u32 %v3208, 7
    %v3210 = vsub.s32 %v3207, %v3209
    %v3211 = vrot.slane %v3189, %v3210
    %v3213 = vunpack.c.l.s4 1966171168
    %v3214 = vunpack.c.0.s8 %v3213
    %v3215 = vlaneseq
    %v3216 = vshrl.u32 %v3215, 7
    %v3217 = vsub.s32 %v3214, %v3216
    %v3218 = vrot.slane %v3190, %v3217
    %v3219 = vcombine.low %v3197, %v3204
    %v3220 = vcombine.low %v3211, %v3218
    %v3222 = vunpack.c.l.s4 1966171168
    %v3223 = vunpack.c.0.s8 %v3222
    %v3224 = vlaneseq
    %v3225 = vshrl.u32 %v3224, 7
    %v3226 = vsub.s32 %v3223, %v3225
    %v3227 = vrot.slane %v3219, %v3226
    %v3229 = vunpack.c.l.s4 1966171168
    %v3230 = vunpack.c.0.s8 %v3229
    %v3231 = vlaneseq
    %v3232 = vshrl.u32 %v3231, 7
    %v3233 = vsub.s32 %v3230, %v3232
    %v3234 = vrot.slane %v3220, %v3233
    %v3235 = vcombine.low %v3227, %v3234
    %3236 = vset.pattern.permute.xlu0 0
    %3237 = vperm.xlu0 %3236, %v2010
    %v3238 = vpop.permute.xlu0 %3237
    %3239 = vset.pattern.permute.xlu0 0
    %3240 = vperm.xlu0 %3239, %v2059
    %v3241 = vpop.permute.xlu0 %3240
    %3242 = vset.pattern.permute.xlu0 0
    %3243 = vperm.xlu0 %3242, %v2108
    %v3244 = vpop.permute.xlu0 %3243
    %3245 = vset.pattern.permute.xlu0 0
    %3246 = vperm.xlu0 %3245, %v2157
    %v3247 = vpop.permute.xlu0 %3246
    %3248 = vset.pattern.permute.xlu0 0
    %3249 = vperm.xlu0 %3248, %v2206
    %v3250 = vpop.permute.xlu0 %3249
    %3251 = vset.pattern.permute.xlu0 0
    %3252 = vperm.xlu0 %3251, %v2255
    %v3253 = vpop.permute.xlu0 %3252
    %3254 = vset.pattern.permute.xlu0 0
    %3255 = vperm.xlu0 %3254, %v2304
    %v3256 = vpop.permute.xlu0 %3255
    %3257 = vset.pattern.permute.xlu0 0
    %3258 = vperm.xlu0 %3257, %v2353
    %v3259 = vpop.permute.xlu0 %3258
    %3260 = vset.pattern.permute.xlu0 0
    %3261 = vperm.xlu0 %3260, %v2402
    %v3262 = vpop.permute.xlu0 %3261
    %3263 = vset.pattern.permute.xlu0 0
    %3264 = vperm.xlu0 %3263, %v2451
    %v3265 = vpop.permute.xlu0 %3264
    %3266 = vset.pattern.permute.xlu0 0
    %3267 = vperm.xlu0 %3266, %v2500
    %v3268 = vpop.permute.xlu0 %3267
    %3269 = vset.pattern.permute.xlu0 0
    %3270 = vperm.xlu0 %3269, %v2549
    %v3271 = vpop.permute.xlu0 %3270
    %3272 = vset.pattern.permute.xlu0 0
    %3273 = vperm.xlu0 %3272, %v2598
    %v3274 = vpop.permute.xlu0 %3273
    %3275 = vset.pattern.permute.xlu0 0
    %3276 = vperm.xlu0 %3275, %v2647
    %v3277 = vpop.permute.xlu0 %3276
    %3278 = vset.pattern.permute.xlu0 0
    %3279 = vperm.xlu0 %3278, %v2696
    %v3280 = vpop.permute.xlu0 %3279
    %3281 = vset.pattern.permute.xlu0 0
    %3282 = vperm.xlu0 %3281, %v2745
    %v3283 = vpop.permute.xlu0 %3282
    %3284 = vset.pattern.permute.xlu0 0
    %3285 = vperm.xlu0 %3284, %v2794
    %v3286 = vpop.permute.xlu0 %3285
    %3287 = vset.pattern.permute.xlu0 0
    %3288 = vperm.xlu0 %3287, %v2843
    %v3289 = vpop.permute.xlu0 %3288
    %3290 = vset.pattern.permute.xlu0 0
    %3291 = vperm.xlu0 %3290, %v2892
    %v3292 = vpop.permute.xlu0 %3291
    %3293 = vset.pattern.permute.xlu0 0
    %3294 = vperm.xlu0 %3293, %v2941
    %v3295 = vpop.permute.xlu0 %3294
    %3296 = vset.pattern.permute.xlu0 0
    %3297 = vperm.xlu0 %3296, %v2990
    %v3298 = vpop.permute.xlu0 %3297
    %3299 = vset.pattern.permute.xlu0 0
    %3300 = vperm.xlu0 %3299, %v3039
    %v3301 = vpop.permute.xlu0 %3300
    %3302 = vset.pattern.permute.xlu0 0
    %3303 = vperm.xlu0 %3302, %v3088
    %v3304 = vpop.permute.xlu0 %3303
    %3305 = vset.pattern.permute.xlu0 0
    %3306 = vperm.xlu0 %3305, %v3137
    %v3307 = vpop.permute.xlu0 %3306
    %3308 = vset.pattern.permute.xlu0 0
    %3309 = vperm.xlu0 %3308, %v3186
    %v3310 = vpop.permute.xlu0 %3309
    %3311 = vset.pattern.permute.xlu0 0
    %3312 = vperm.xlu0 %3311, %v3235
    %v3313 = vpop.permute.xlu0 %3312
    %v3314 = vlaneseq
    %v3315 = vand.u32 %v3314, 127
    %v3316 = vlaneseq
    %v3317 = vshrl.u32 %v3316, 7
    %v3318 = vsub.s32 %v3315, %v3317
    %v3319 = vrot.slane %v3238, %v3318
    %v3320 = vadd.s32 %v3315, 4294967288
    %v3321 = vlaneseq
    %v3322 = vshrl.u32 %v3321, 7
    %v3323 = vsub.s32 %v3320, %v3322
    %v3324 = vrot.slane %v3241, %v3323
    %vm3325 = vcmask 130112
    %v3326 = vsel %vm3325, %v3324, %v3319
    %v3327 = vadd.s32 %v3315, 4294967280
    %v3328 = vlaneseq
    %v3329 = vshrl.u32 %v3328, 7
    %v3330 = vsub.s32 %v3327, %v3329
    %v3331 = vrot.slane %v3244, %v3330
    %vm3332 = vcmask 195712
    %v3333 = vsel %vm3332, %v3331, %v3326
    %v3334 = vadd.s32 %v3315, 4294967272
    %v3335 = vlaneseq
    %v3336 = vshrl.u32 %v3335, 7
    %v3337 = vsub.s32 %v3334, %v3336
    %v3338 = vrot.slane %v3247, %v3337
    %vm3339 = vcmask 261312
    %v3340 = vsel %vm3339, %v3338, %v3333
    %v3341 = vadd.s32 %v3315, 4294967264
    %v3342 = vlaneseq
    %v3343 = vshrl.u32 %v3342, 7
    %v3344 = vsub.s32 %v3341, %v3343
    %v3345 = vrot.slane %v3250, %v3344
    %vm3346 = vcmask 326912
    %v3347 = vsel %vm3346, %v3345, %v3340
    %v3348 = vadd.s32 %v3315, 4294967256
    %v3349 = vlaneseq
    %v3350 = vshrl.u32 %v3349, 7
    %v3351 = vsub.s32 %v3348, %v3350
    %v3352 = vrot.slane %v3253, %v3351
    %vm3353 = vcmask 392512
    %v3354 = vsel %vm3353, %v3352, %v3347
    %v3355 = vadd.s32 %v3315, 4294967248
    %v3356 = vlaneseq
    %v3357 = vshrl.u32 %v3356, 7
    %v3358 = vsub.s32 %v3355, %v3357
    %v3359 = vrot.slane %v3256, %v3358
    %vm3360 = vcmask 458112
    %v3361 = vsel %vm3360, %v3359, %v3354
    %v3362 = vadd.s32 %v3315, 4294967240
    %v3363 = vlaneseq
    %v3364 = vshrl.u32 %v3363, 7
    %v3365 = vsub.s32 %v3362, %v3364
    %v3366 = vrot.slane %v3259, %v3365
    %vm3367 = vcmask 523712
    %v3368 = vsel %vm3367, %v3366, %v3361
    %v3369 = vadd.s32 %v3315, 4294967232
    %v3370 = vlaneseq
    %v3371 = vshrl.u32 %v3370, 7
    %v3372 = vsub.s32 %v3369, %v3371
    %v3373 = vrot.slane %v3262, %v3372
    %vm3374 = vcmask 589312
    %v3375 = vsel %vm3374, %v3373, %v3368
    %v3376 = vadd.s32 %v3315, 4294967224
    %v3377 = vlaneseq
    %v3378 = vshrl.u32 %v3377, 7
    %v3379 = vsub.s32 %v3376, %v3378
    %v3380 = vrot.slane %v3265, %v3379
    %vm3381 = vcmask 654912
    %v3382 = vsel %vm3381, %v3380, %v3375
    %v3383 = vadd.s32 %v3315, 4294967216
    %v3384 = vlaneseq
    %v3385 = vshrl.u32 %v3384, 7
    %v3386 = vsub.s32 %v3383, %v3385
    %v3387 = vrot.slane %v3268, %v3386
    %vm3388 = vcmask 720512
    %v3389 = vsel %vm3388, %v3387, %v3382
    %v3390 = vadd.s32 %v3315, 4294967208
    %v3391 = vlaneseq
    %v3392 = vshrl.u32 %v3391, 7
    %v3393 = vsub.s32 %v3390, %v3392
    %v3394 = vrot.slane %v3271, %v3393
    %vm3395 = vcmask 786112
    %v3396 = vsel %vm3395, %v3394, %v3389
    %v3397 = vadd.s32 %v3315, 4294967200
    %v3398 = vlaneseq
    %v3399 = vshrl.u32 %v3398, 7
    %v3400 = vsub.s32 %v3397, %v3399
    %v3401 = vrot.slane %v3274, %v3400
    %vm3402 = vcmask 851712
    %v3403 = vsel %vm3402, %v3401, %v3396
    %v3404 = vadd.s32 %v3315, 4294967192
    %v3405 = vlaneseq
    %v3406 = vshrl.u32 %v3405, 7
    %v3407 = vsub.s32 %v3404, %v3406
    %v3408 = vrot.slane %v3277, %v3407
    %vm3409 = vcmask 917312
    %v3410 = vsel %vm3409, %v3408, %v3403
    %v3411 = vadd.s32 %v3315, 4294967184
    %v3412 = vlaneseq
    %v3413 = vshrl.u32 %v3412, 7
    %v3414 = vsub.s32 %v3411, %v3413
    %v3415 = vrot.slane %v3280, %v3414
    %vm3416 = vcmask 982912
    %v3417 = vsel %vm3416, %v3415, %v3410
    %v3418 = vadd.s32 %v3315, 4294967176
    %v3419 = vlaneseq
    %v3420 = vshrl.u32 %v3419, 7
    %v3421 = vsub.s32 %v3418, %v3420
    %v3422 = vrot.slane %v3283, %v3421
    %vm3423 = vcmask 1048512
    %v3424 = vsel %vm3423, %v3422, %v3417
    %v3425 = vlaneseq
    %v3426 = vshrl.u32 %v3425, 7
    %v3427 = vsub.s32 %v3315, %v3426
    %v3428 = vrot.slane %v3286, %v3427
    %v3429 = vlaneseq
    %v3430 = vshrl.u32 %v3429, 7
    %v3431 = vsub.s32 %v3320, %v3430
    %v3432 = vrot.slane %v3289, %v3431
    %v3433 = vsel %vm3325, %v3432, %v3428
    %v3434 = vlaneseq
    %v3435 = vshrl.u32 %v3434, 7
    %v3436 = vsub.s32 %v3327, %v3435
    %v3437 = vrot.slane %v3292, %v3436
    %v3438 = vsel %vm3332, %v3437, %v3433
    %v3439 = vlaneseq
    %v3440 = vshrl.u32 %v3439, 7
    %v3441 = vsub.s32 %v3334, %v3440
    %v3442 = vrot.slane %v3295, %v3441
    %v3443 = vsel %vm3339, %v3442, %v3438
    %v3444 = vlaneseq
    %v3445 = vshrl.u32 %v3444, 7
    %v3446 = vsub.s32 %v3341, %v3445
    %v3447 = vrot.slane %v3298, %v3446
    %v3448 = vsel %vm3346, %v3447, %v3443
    %v3449 = vlaneseq
    %v3450 = vshrl.u32 %v3449, 7
    %v3451 = vsub.s32 %v3348, %v3450
    %v3452 = vrot.slane %v3301, %v3451
    %v3453 = vsel %vm3353, %v3452, %v3448
    %v3454 = vlaneseq
    %v3455 = vshrl.u32 %v3454, 7
    %v3456 = vsub.s32 %v3355, %v3455
    %v3457 = vrot.slane %v3304, %v3456
    %v3458 = vsel %vm3360, %v3457, %v3453
    %v3459 = vlaneseq
    %v3460 = vshrl.u32 %v3459, 7
    %v3461 = vsub.s32 %v3362, %v3460
    %v3462 = vrot.slane %v3307, %v3461
    %v3463 = vsel %vm3367, %v3462, %v3458
    %v3464 = vlaneseq
    %v3465 = vshrl.u32 %v3464, 7
    %v3466 = vsub.s32 %v3369, %v3465
    %v3467 = vrot.slane %v3310, %v3466
    %v3468 = vsel %vm3374, %v3467, %v3463
    %v3469 = vlaneseq
    %v3470 = vshrl.u32 %v3469, 7
    %v3471 = vsub.s32 %v3376, %v3470
    %v3472 = vrot.slane %v3313, %v3471
    %v3473 = vsel %vm3381, %v3472, %v3468
    %v3474 = vcombine.low %v3424, %v3473
    %v3476 = vunpack.c.l.s4 1966171168
    %v3477 = vunpack.c.0.s8 %v3476
    %v3478 = vlaneseq
    %v3479 = vshrl.u32 %v3478, 7
    %v3480 = vsub.s32 %v3477, %v3479
    %v3481 = vrot.slane %v3474, %v3480
    %v3483 = vunpack.c.l.s4 1966171168
    %v3484 = vunpack.c.0.s8 %v3483
    %v3485 = vlaneseq
    %v3486 = vshrl.u32 %v3485, 7
    %v3487 = vsub.s32 %v3484, %v3486
    %v3488 = vrot.slane %v3481, %v3487
    %v3490 = vlaneseq
    %vm3491 = vcmp.ge.s32.totalorder %v3490, 0
    %vm3492 = vcmp.lt.s32.totalorder %v3490, 208
    %vm3493 = vmand %vm3491, %vm3492
    %3494 = vst.msk [vmem:[#allocation12] sm:$0x3] %vm3493, %v3488
    // Predicated region
    $region34: #{tpu_custom_call.1} parent=1 // pred_check
      _
    $region35: #{tpu_custom_call.1} parent=1 // pred_check_branch
      %3496 = sbr.rel (0) target = $region37
    $region36: #{tpu_custom_call.1} parent=1 // pred_region
      %s3498 = ssub.s32 32, 32
      %3499 = vsyncadd [#allocation6], %s3498
      %s3501 = sshll.u32 [#allocation12], 4
      %s3502 = int_to_ptr.vmem [resolvable:$true] %s3501
      %3504 = dma.vmem_to_hbm [thread:$0]  %s3502, 32, %s5, [#allocation6]
    $region37: #{tpu_custom_call.1} parent=1 // pred_fallthru
      _
    // Predicated region
    $region38: #{tpu_custom_call.1} parent=1 // pred_check
      _
    $region39: #{tpu_custom_call.1} parent=1 // pred_check_branch
      %3506 = sbr.rel (0) target = $region41
    $region40: #{tpu_custom_call.1} parent=1 // pred_region
      %3507 = dma.done [#allocation6], 32
    $region41: #{tpu_custom_call.1} parent=1 // pred_fallthru
      _
    %3508 = vsyncpa [#allocation5], 1
    %3509 = vsyncpa [#allocation8], 1
    %3510 = vsyncpa [#allocation11], 1
    %3511 = vsyncpa [#allocation6], 1

</llo_original>
